<compile_context>
chip_gen: v7x
topology: tpu7x:2x2x1
jax: 0.10.0
libtpu: 0.0.40
codegen_flags: <defaults>
</compile_context>

<pallas_src>
import jax
import jax.numpy as jnp
from jax import lax
from jax.experimental import pallas as pl
from jax.experimental.pallas import tpu as pltpu

_LANES = 128          # lane-dense padded class dimension
_NEG_BIG = -1e30      # bias for padded classes -> exp() underflows to 0


def _round_up(x, m):
    return (x + m - 1) // m * m


def _make_kernel(total_b, tile_b):
    """Kernel closed over the static batch size / tile size (for tail masking)."""

    def kernel(x_ref, lab_ref, w1_ref, b1_ref, w2_ref, b2_ref,
               wo_ref, bo_ref, prob_ref, loss_ref):
        f32, bf16 = jnp.float32, jnp.bfloat16

        # --- ClassificationHead: bf16 x bf16 matmuls, f32 accumulation ------
        x = x_ref[...]                                                  # (TB,H) bf16
        h = jnp.dot(x, w1_ref[...], preferred_element_type=f32) + b1_ref[...]
        h = jnp.maximum(h, 0.0).astype(bf16)
        h = jnp.dot(h, w2_ref[...], preferred_element_type=f32) + b2_ref[...]
        h = jnp.maximum(h, 0.0).astype(bf16)
        logits = jnp.dot(h, wo_ref[...], preferred_element_type=f32) + bo_ref[...]

        # --- numerically-stable softmax (padded classes -> exp == 0) --------
        m = jnp.max(logits, axis=-1, keepdims=True)                     # (TB,1)
        z = logits - m
        e = jnp.exp(z)
        s = jnp.sum(e, axis=-1, keepdims=True)                          # (TB,1)
        prob_ref[...] = (e * pl.reciprocal(s, approx=True)).astype(prob_ref.dtype)

        # --- cross entropy from the shifted logits ---------------------------
        lab = lab_ref[...]                                              # (TB,1) int32
        onehot = lax.broadcasted_iota(jnp.int32, z.shape, 1) == lab     # (TB,128)
        picked_z = jnp.sum(jnp.where(onehot, z, 0.0), axis=-1, keepdims=True)
        picked_e = jnp.sum(jnp.where(onehot, e, 0.0), axis=-1, keepdims=True)
        ce = jnp.log(s) - picked_z                                      # (TB,1)
        pt = picked_e / s           # == exp(-ce); reuses e, saves one EUP exp/row

        # --- FocalLoss(gamma=2); tail rows beyond B masked via row index -----
        focal = (1.0 - pt) * (1.0 - pt) * ce
        row = (pl.program_id(0) * tile_b
               + lax.broadcasted_iota(jnp.int32, (tile_b, 1), 0))
        valid = row < total_b
        loss_ref[...] = jnp.sum(jnp.where(valid, focal, 0.0),
                                axis=0, keepdims=True).reshape(1, 1, 1)

    return kernel


def _build_pallas_call(B, H, CP, TB, n_tiles, *, single_buffer_weights):
    const_kw = {"pipeline_mode": pl.Buffered(1)} if single_buffer_weights else {}

    def batch_spec(shape):
        return pl.BlockSpec(shape, lambda i: (i, 0))

    def const_spec(shape):
        return pl.BlockSpec(shape, lambda i: (0, 0), **const_kw)

    # VMEM footprint (bf16 weights, bf16 activation/prob tiles, f32 biases).
    wbuf = 1 if single_buffer_weights else 2
    weight_bytes = (2 * H * H + H * CP) * 2 + (2 * H + CP) * 4
    tile_bytes = (TB * H * 2          # x tile (bf16)
                  + TB * _LANES * 4   # labels (TB,1) padded to 128 lanes
                  + TB * CP * 2       # prob tile (bf16)
                  + 8 * _LANES * 4)   # loss partial (padded)
    footprint = wbuf * weight_bytes + 2 * tile_bytes
    # Explicit limit: v5e defaults to only 16 MiB scoped VMEM. Cap below
    # physical; >64 MiB footprints on v7x need the K-tiling TODO above.
    vmem_limit = int(min(max(footprint * 1.25 + (2 << 20), 32 << 20), 100 << 20))

    cost = pl.CostEstimate(
        flops=int(2 * B * H * (2 * H + CP)),
        transcendentals=int(B * (CP + 2)),
        bytes_accessed=int(2 * B * H + 4 * B + 2 * (2 * H * H + H * CP)
                           + 4 * (2 * H + CP) + 2 * B * CP + 4 * n_tiles),
    )

    return pl.pallas_call(
        _make_kernel(B, TB),
        grid=(n_tiles,),
        in_specs=[
            batch_spec((TB, H)),       # CLS tile (bf16)
            batch_spec((TB, 1)),       # labels tile (int32)
            const_spec((H, H)),        # W1 (in, out) — VMEM-resident
            const_spec((1, H)),        # b1
            const_spec((H, H)),        # W2
            const_spec((1, H)),        # b2
            const_spec((H, CP)),       # Wout (lane-padded)
            const_spec((1, CP)),       # bout (lane-padded)
        ],
        out_specs=[
            batch_spec((TB, CP)),                              # prob (bf16, lane-dense)
            pl.BlockSpec((1, 1, 1), lambda i: (i, 0, 0)),      # per-tile focal sum
        ],
        out_shape=[
            jax.ShapeDtypeStruct((B, CP), jnp.bfloat16),
            jax.ShapeDtypeStruct((n_tiles, 1, 1), jnp.float32),
        ],
        compiler_params=pltpu.CompilerParams(
            dimension_semantics=("parallel",),
            vmem_limit_bytes=vmem_limit),
        cost_estimate=cost,
    )


def llm_gnn_fusion_forward(cls_token, labels, params, num_classes, block_b=512):
    """Fused classifier + focal loss + softmax.  Returns (loss, prob[:, :C])."""
    B, H = cls_token.shape
    C = num_classes
    CP = _LANES
    assert C <= CP

    # Batch tile: large (amortizes ~0.35us/step overhead) but clamped so the
    # grid keeps >= 2 tiles when possible (both v7x TensorCores busy).
    TB = _round_up(min(block_b, max((B + 1) // 2, 8)), 8)
    n_tiles = pl.cdiv(B, TB)

    bf16, f32 = jnp.bfloat16, jnp.float32
    w1, b1, w2, b2, wo, bo = params

    # bf16 weights/activations (MXU-native on v5e/v6e/v7x); no host-side pad copy.
    x = cls_token.astype(bf16)
    lab = labels.astype(jnp.int32).reshape(B, 1)
    w1 = w1.astype(bf16)
    w2 = w2.astype(bf16)
    b1 = b1.reshape(1, H).astype(f32)
    b2 = b2.reshape(1, H).astype(f32)
    # Lane-dense output layer: zero weights / -1e30 bias on padded classes.
    wo_pad = jnp.zeros((H, CP), bf16).at[:, :C].set(wo.astype(bf16))
    bo_pad = jnp.full((1, CP), _NEG_BIG, f32).at[0, :C].set(bo.astype(f32))

    args = (x, lab, w1, b1, w2, b2, wo_pad, bo_pad)

    try:
        # Constant weight/bias blocks single-buffered (block index never changes).
        prob_pad, loss_part = _build_pallas_call(
            B, H, CP, TB, n_tiles, single_buffer_weights=True)(*args)
    except Exception:
        # Fallback if this JAX build rejects pipeline_mode on pallas_call specs.
        prob_pad, loss_part = _build_pallas_call(
            B, H, CP, TB, n_tiles, single_buffer_weights=False)(*args)

    loss = jnp.sum(loss_part) / B
    prob = prob_pad[:, :C].astype(f32)
    return loss, prob


def init_params(key, hidden, num_classes):
    """Deterministic parameter init (shapes match ClassificationHead)."""
    ks = jax.random.split(key, 6)
    s = 1.0 / jnp.sqrt(hidden)
    # weights stored pre-transposed: (in_dim, out_dim)
    w1 = jax.random.uniform(ks[0], (hidden, hidden), jnp.float32, -s, s)
    b1 = jax.random.uniform(ks[1], (hidden,), jnp.float32, -s, s)
    w2 = jax.random.uniform(ks[2], (hidden, hidden), jnp.float32, -s, s)
    b2 = jax.random.uniform(ks[3], (hidden,), jnp.float32, -s, s)
    wo = jax.random.uniform(ks[4], (hidden, num_classes), jnp.float32, -s, s)
    bo = jax.random.uniform(ks[5], (num_classes,), jnp.float32, -s, s)
    return (w1, b1, w2, b2, wo, bo)


if __name__ == "__main__":
    key = jax.random.PRNGKey(0)
    # B=12 with block_b=8 exercises 2 batch tiles + an in-kernel-masked tail.
    # (Note: H here is tiny for the self-test; benchmark with H, TB multiples
    # of 128/256 to actually exercise the MXU.)
    B, H, C = 12, 32, 9

    k_cls, k_lab, k_par = jax.random.split(key, 3)
    cls_token = jax.random.normal(k_cls, (B, H), dtype=jnp.float32)
    labels = jax.random.randint(k_lab, (B,), 0, C, dtype=jnp.int32)
    params = init_params(k_par, H, C)

    loss, prob = llm_gnn_fusion_forward(cls_token, labels, params, C, block_b=8)
    jax.block_until_ready((loss, prob))

    # pure-JAX reference with the same bf16-weight / f32-accumulate numerics.
    w1, b1, w2, b2, wo, bo = params
    bf16 = jnp.bfloat16

    def mm(a, w):
        return jnp.dot(a.astype(bf16), w.astype(bf16),
                       preferred_element_type=jnp.float32)

    h = jax.nn.relu(mm(cls_token, w1) + b1)
    h = jax.nn.relu(mm(h, w2) + b2)
    logits = mm(h, wo) + bo
    ce = -jnp.take_along_axis(jax.nn.log_softmax(logits, -1),
                              labels[:, None], axis=-1)[:, 0]
    ref_loss = jnp.mean((1.0 - jnp.exp(-ce)) ** 2 * ce)
    ref_prob = jax.nn.softmax(logits, axis=-1)

    assert jnp.allclose(loss, ref_loss, atol=1e-4, rtol=1e-4), (
        float(loss), float(ref_loss))
    # prob uses the EUP approx reciprocal and is stored in bf16 -> loose tol
    assert jnp.allclose(prob, ref_prob, atol=5e-3), float(
        jnp.max(jnp.abs(prob - ref_prob)))

    print("KERNEL_OK")
</pallas_src>

<mosaic_0001>
module attributes {stable_mosaic.version = 11 : i64} {
  func.func @kernel(%arg0: i32, %arg1: memref<8x32xbf16, #tpu.memory_space<vmem>>, %arg2: memref<8x1xi32, #tpu.memory_space<vmem>>, %arg3: memref<32x32xbf16, #tpu.memory_space<vmem>>, %arg4: memref<1x32xf32, #tpu.memory_space<vmem>>, %arg5: memref<32x32xbf16, #tpu.memory_space<vmem>>, %arg6: memref<1x32xf32, #tpu.memory_space<vmem>>, %arg7: memref<32x128xbf16, #tpu.memory_space<vmem>>, %arg8: memref<1x128xf32, #tpu.memory_space<vmem>>, %arg9: memref<8x128xbf16, #tpu.memory_space<vmem>>, %arg10: memref<1x1x1xf32, #tpu.memory_space<vmem>>) attributes {dimension_semantics = [#tpu.dimension_semantics<parallel>], iteration_bounds = array<i64: 2>, scalar_prefetch = 0 : i64, scratch_operands = 0 : i64, tpu.core_type = #tpu.core_type<tc>, window_params = [{transform_indices = @transform_0, window_bounds = array<i64: 8, 32>}, {transform_indices = @transform_1, window_bounds = array<i64: 8, 1>}, {pipeline_mode = #tpu.pipeline_mode<synchronous>, transform_indices = @transform_2, window_bounds = array<i64: 32, 32>}, {pipeline_mode = #tpu.pipeline_mode<synchronous>, transform_indices = @transform_3, window_bounds = array<i64: 1, 32>}, {pipeline_mode = #tpu.pipeline_mode<synchronous>, transform_indices = @transform_4, window_bounds = array<i64: 32, 32>}, {pipeline_mode = #tpu.pipeline_mode<synchronous>, transform_indices = @transform_5, window_bounds = array<i64: 1, 32>}, {pipeline_mode = #tpu.pipeline_mode<synchronous>, transform_indices = @transform_6, window_bounds = array<i64: 32, 128>}, {pipeline_mode = #tpu.pipeline_mode<synchronous>, transform_indices = @transform_7, window_bounds = array<i64: 1, 128>}, {transform_indices = @transform_8, window_bounds = array<i64: 8, 128>}, {transform_indices = @transform_9, window_bounds = array<i64: 1, 1, 1>}]} {
    %c0 = arith.constant 0 : index
    %c0_0 = arith.constant 0 : index
    %0 = vector.load %arg1[%c0, %c0_0] : memref<8x32xbf16, #tpu.memory_space<vmem>>, vector<8x32xbf16>
    %c0_1 = arith.constant 0 : index
    %c0_2 = arith.constant 0 : index
    %1 = vector.load %arg3[%c0_1, %c0_2] : memref<32x32xbf16, #tpu.memory_space<vmem>>, vector<32x32xbf16>
    %cst = arith.constant dense<0.000000e+00> : vector<8x32xf32>
    %2 = tpu.matmul %0, %1, %cst {dimension_numbers = #tpu.dot_dimension_numbers<[1], [0], [0], [1], [0, 0, 1, 1], [], []>} : vector<8x32xbf16>, vector<32x32xbf16>, vector<8x32xf32> -> vector<8x32xf32>
    %c0_3 = arith.constant 0 : index
    %c0_4 = arith.constant 0 : index
    %3 = vector.load %arg4[%c0_3, %c0_4] : memref<1x32xf32, #tpu.memory_space<vmem>>, vector<1x32xf32>
    %4 = vector.broadcast %3 : vector<1x32xf32> to vector<8x32xf32>
    %5 = arith.addf %2, %4 : vector<8x32xf32>
    %cst_5 = arith.constant 0.000000e+00 : f32
    %6 = vector.broadcast %cst_5 : f32 to vector<8x32xf32>
    %7 = arith.maximumf %5, %6 : vector<8x32xf32>
    %8 = arith.truncf %7 : vector<8x32xf32> to vector<8x32xbf16>
    %c0_6 = arith.constant 0 : index
    %c0_7 = arith.constant 0 : index
    %9 = vector.load %arg5[%c0_6, %c0_7] : memref<32x32xbf16, #tpu.memory_space<vmem>>, vector<32x32xbf16>
    %cst_8 = arith.constant dense<0.000000e+00> : vector<8x32xf32>
    %10 = tpu.matmul %8, %9, %cst_8 {dimension_numbers = #tpu.dot_dimension_numbers<[1], [0], [0], [1], [0, 0, 1, 1], [], []>} : vector<8x32xbf16>, vector<32x32xbf16>, vector<8x32xf32> -> vector<8x32xf32>
    %c0_9 = arith.constant 0 : index
    %c0_10 = arith.constant 0 : index
    %11 = vector.load %arg6[%c0_9, %c0_10] : memref<1x32xf32, #tpu.memory_space<vmem>>, vector<1x32xf32>
    %12 = vector.broadcast %11 : vector<1x32xf32> to vector<8x32xf32>
    %13 = arith.addf %10, %12 : vector<8x32xf32>
    %cst_11 = arith.constant 0.000000e+00 : f32
    %14 = vector.broadcast %cst_11 : f32 to vector<8x32xf32>
    %15 = arith.maximumf %13, %14 : vector<8x32xf32>
    %16 = arith.truncf %15 : vector<8x32xf32> to vector<8x32xbf16>
    %c0_12 = arith.constant 0 : index
    %c0_13 = arith.constant 0 : index
    %17 = vector.load %arg7[%c0_12, %c0_13] : memref<32x128xbf16, #tpu.memory_space<vmem>>, vector<32x128xbf16>
    %cst_14 = arith.constant dense<0.000000e+00> : vector<8x128xf32>
    %18 = tpu.matmul %16, %17, %cst_14 {dimension_numbers = #tpu.dot_dimension_numbers<[1], [0], [0], [1], [0, 0, 1, 1], [], []>} : vector<8x32xbf16>, vector<32x128xbf16>, vector<8x128xf32> -> vector<8x128xf32>
    %c0_15 = arith.constant 0 : index
    %c0_16 = arith.constant 0 : index
    %19 = vector.load %arg8[%c0_15, %c0_16] : memref<1x128xf32, #tpu.memory_space<vmem>>, vector<1x128xf32>
    %20 = vector.broadcast %19 : vector<1x128xf32> to vector<8x128xf32>
    %21 = arith.addf %18, %20 : vector<8x128xf32>
    %cst_17 = arith.constant dense<0xFF800000> : vector<8xf32>
    %22 = vector.multi_reduction <maximumf>, %21, %cst_17 [1] : vector<8x128xf32> to vector<8xf32>
    %23 = vector.shape_cast %22 : vector<8xf32> to vector<8x1xf32>
    %24 = vector.broadcast %23 : vector<8x1xf32> to vector<8x128xf32>
    %25 = arith.subf %21, %24 : vector<8x128xf32>
    %26 = math.exp %25 : vector<8x128xf32>
    %cst_18 = arith.constant dense<0.000000e+00> : vector<8xf32>
    %27 = vector.multi_reduction <add>, %26, %cst_18 [1] : vector<8x128xf32> to vector<8xf32>
    %28 = vector.shape_cast %27 : vector<8xf32> to vector<8x1xf32>
    %29 = tpu.reciprocal %28 {approx = true} : vector<8x1xf32> -> vector<8x1xf32>
    %30 = vector.broadcast %29 : vector<8x1xf32> to vector<8x128xf32>
    %31 = arith.mulf %26, %30 : vector<8x128xf32>
    %32 = arith.truncf %31 : vector<8x128xf32> to vector<8x128xbf16>
    %c0_19 = arith.constant 0 : index
    %c0_20 = arith.constant 0 : index
    %33 = vector.load %arg9[%c0_19, %c0_20] : memref<8x128xbf16, #tpu.memory_space<vmem>>, vector<8x128xbf16>
    tpu.vector_store %arg9[%c0_19, %c0_20], %32 {strides = array<i32>} : memref<8x128xbf16, #tpu.memory_space<vmem>>, vector<8x128xbf16>,
    %c0_21 = arith.constant 0 : index
    %c0_22 = arith.constant 0 : index
    %34 = vector.load %arg2[%c0_21, %c0_22] : memref<8x1xi32, #tpu.memory_space<vmem>>, vector<8x1xi32>
    %35 = tpu.iota {dimensions = array<i32: 1>} : vector<8x128xi32>
    %36 = vector.broadcast %34 : vector<8x1xi32> to vector<8x128xi32>
    %37 = arith.cmpi eq, %35, %36 : vector<8x128xi32>
    %cst_23 = arith.constant 0.000000e+00 : f32
    %38 = vector.broadcast %cst_23 : f32 to vector<8x128xf32>
    %39 = arith.select %37, %25, %38 : vector<8x128xi1>, vector<8x128xf32>
    %cst_24 = arith.constant dense<0.000000e+00> : vector<8xf32>
    %40 = vector.multi_reduction <add>, %39, %cst_24 [1] : vector<8x128xf32> to vector<8xf32>
    %41 = vector.shape_cast %40 : vector<8xf32> to vector<8x1xf32>
    %cst_25 = arith.constant 0.000000e+00 : f32
    %42 = vector.broadcast %cst_25 : f32 to vector<8x128xf32>
    %43 = arith.select %37, %26, %42 : vector<8x128xi1>, vector<8x128xf32>
    %cst_26 = arith.constant dense<0.000000e+00> : vector<8xf32>
    %44 = vector.multi_reduction <add>, %43, %cst_26 [1] : vector<8x128xf32> to vector<8xf32>
    %45 = vector.shape_cast %44 : vector<8xf32> to vector<8x1xf32>
    %46 = math.log %28 : vector<8x1xf32>
    %47 = arith.subf %46, %41 : vector<8x1xf32>
    %48 = arith.divf %45, %28 : vector<8x1xf32>
    %cst_27 = arith.constant 1.000000e+00 : f32
    %49 = vector.broadcast %cst_27 : f32 to vector<8x1xf32>
    %50 = arith.subf %49, %48 : vector<8x1xf32>
    %cst_28 = arith.constant 1.000000e+00 : f32
    %51 = vector.broadcast %cst_28 : f32 to vector<8x1xf32>
    %52 = arith.subf %51, %48 : vector<8x1xf32>
    %53 = arith.mulf %50, %52 : vector<8x1xf32>
    %54 = arith.mulf %53, %47 : vector<8x1xf32>
    %c8_i32 = arith.constant 8 : i32
    %55 = arith.muli %arg0, %c8_i32 : i32
    %56 = tpu.iota {dimensions = array<i32: 0>} : vector<8x1xi32>
    %57 = vector.broadcast %55 : i32 to vector<8x1xi32>
    %58 = arith.addi %57, %56 : vector<8x1xi32>
    %c12_i32 = arith.constant 12 : i32
    %59 = vector.broadcast %c12_i32 : i32 to vector<8x1xi32>
    %60 = arith.cmpi slt, %58, %59 : vector<8x1xi32>
    %cst_29 = arith.constant 0.000000e+00 : f32
    %61 = vector.broadcast %cst_29 : f32 to vector<8x1xf32>
    %62 = arith.select %60, %54, %61 : vector<8x1xi1>, vector<8x1xf32>
    %cst_30 = arith.constant dense<0.000000e+00> : vector<1xf32>
    %63 = vector.multi_reduction <add>, %62, %cst_30 [0] : vector<8x1xf32> to vector<1xf32>
    %64 = vector.shape_cast %63 : vector<1xf32> to vector<1x1xf32>
    %65 = vector.shape_cast %64 : vector<1x1xf32> to vector<1x1x1xf32>
    %c0_31 = arith.constant 0 : index
    %c0_32 = arith.constant 0 : index
    %c0_33 = arith.constant 0 : index
    %66 = vector.load %arg10[%c0_31, %c0_32, %c0_33] : memref<1x1x1xf32, #tpu.memory_space<vmem>>, vector<1x1x1xf32>
    tpu.vector_store %arg10[%c0_31, %c0_32, %c0_33], %65 {strides = array<i32>} : memref<1x1x1xf32, #tpu.memory_space<vmem>>, vector<1x1x1xf32>,
    return
  }
  func.func @transform_0(%arg0: i32) -> (i32, i32) {
    %c0_i32 = arith.constant 0 : i32
    %c0_i32_0 = arith.constant 0 : i32
    return %arg0, %c0_i32 : i32, i32
  }
  func.func @transform_1(%arg0: i32) -> (i32, i32) {
    %c0_i32 = arith.constant 0 : i32
    %c0_i32_0 = arith.constant 0 : i32
    return %arg0, %c0_i32 : i32, i32
  }
  func.func @transform_2(%arg0: i32) -> (i32, i32) {
    %c0_i32 = arith.constant 0 : i32
    %c0_i32_0 = arith.constant 0 : i32
    %c0_i32_1 = arith.constant 0 : i32
    return %c0_i32, %c0_i32_0 : i32, i32
  }
  func.func @transform_3(%arg0: i32) -> (i32, i32) {
    %c0_i32 = arith.constant 0 : i32
    %c0_i32_0 = arith.constant 0 : i32
    %c0_i32_1 = arith.constant 0 : i32
    return %c0_i32, %c0_i32_0 : i32, i32
  }
  func.func @transform_4(%arg0: i32) -> (i32, i32) {
    %c0_i32 = arith.constant 0 : i32
    %c0_i32_0 = arith.constant 0 : i32
    %c0_i32_1 = arith.constant 0 : i32
    return %c0_i32, %c0_i32_0 : i32, i32
  }
  func.func @transform_5(%arg0: i32) -> (i32, i32) {
    %c0_i32 = arith.constant 0 : i32
    %c0_i32_0 = arith.constant 0 : i32
    %c0_i32_1 = arith.constant 0 : i32
    return %c0_i32, %c0_i32_0 : i32, i32
  }
  func.func @transform_6(%arg0: i32) -> (i32, i32) {
    %c0_i32 = arith.constant 0 : i32
    %c0_i32_0 = arith.constant 0 : i32
    %c0_i32_1 = arith.constant 0 : i32
    return %c0_i32, %c0_i32_0 : i32, i32
  }
  func.func @transform_7(%arg0: i32) -> (i32, i32) {
    %c0_i32 = arith.constant 0 : i32
    %c0_i32_0 = arith.constant 0 : i32
    %c0_i32_1 = arith.constant 0 : i32
    return %c0_i32, %c0_i32_0 : i32, i32
  }
  func.func @transform_8(%arg0: i32) -> (i32, i32) {
    %c0_i32 = arith.constant 0 : i32
    %c0_i32_0 = arith.constant 0 : i32
    return %arg0, %c0_i32 : i32, i32
  }
  func.func @transform_9(%arg0: i32) -> (i32, i32, i32) {
    %c0_i32 = arith.constant 0 : i32
    %c0_i32_0 = arith.constant 0 : i32
    %c0_i32_1 = arith.constant 0 : i32
    return %arg0, %c0_i32, %c0_i32_0 : i32, i32, i32
  }
}

module attributes {stable_mosaic.version = 11 : i64} {
  func.func @kernel(%arg0: i32, %arg1: memref<8x32xbf16, #tpu.memory_space<vmem>>, %arg2: memref<8x1xi32, #tpu.memory_space<vmem>>, %arg3: memref<32x32xbf16, #tpu.memory_space<vmem>>, %arg4: memref<1x32xf32, #tpu.memory_space<vmem>>, %arg5: memref<32x32xbf16, #tpu.memory_space<vmem>>, %arg6: memref<1x32xf32, #tpu.memory_space<vmem>>, %arg7: memref<32x128xbf16, #tpu.memory_space<vmem>>, %arg8: memref<1x128xf32, #tpu.memory_space<vmem>>, %arg9: memref<8x128xbf16, #tpu.memory_space<vmem>>, %arg10: memref<1x1x1xf32, #tpu.memory_space<vmem>>) attributes {dimension_semantics = [#tpu.dimension_semantics<parallel>], iteration_bounds = array<i64: 2>, scalar_prefetch = 0 : i64, scratch_operands = 0 : i64, tpu.core_type = #tpu.core_type<tc>, window_params = [{transform_indices = @transform_0, window_bounds = array<i64: 8, 32>}, {transform_indices = @transform_1, window_bounds = array<i64: 8, 1>}, {pipeline_mode = #tpu.pipeline_mode<synchronous>, transform_indices = @transform_2, window_bounds = array<i64: 32, 32>}, {pipeline_mode = #tpu.pipeline_mode<synchronous>, transform_indices = @transform_3, window_bounds = array<i64: 1, 32>}, {pipeline_mode = #tpu.pipeline_mode<synchronous>, transform_indices = @transform_4, window_bounds = array<i64: 32, 32>}, {pipeline_mode = #tpu.pipeline_mode<synchronous>, transform_indices = @transform_5, window_bounds = array<i64: 1, 32>}, {pipeline_mode = #tpu.pipeline_mode<synchronous>, transform_indices = @transform_6, window_bounds = array<i64: 32, 128>}, {pipeline_mode = #tpu.pipeline_mode<synchronous>, transform_indices = @transform_7, window_bounds = array<i64: 1, 128>}, {transform_indices = @transform_8, window_bounds = array<i64: 8, 128>}, {transform_indices = @transform_9, window_bounds = array<i64: 1, 1, 1>}]} {
    %c0 = arith.constant 0 : index
    %c0_0 = arith.constant 0 : index
    %0 = vector.load %arg1[%c0, %c0_0] : memref<8x32xbf16, #tpu.memory_space<vmem>>, vector<8x32xbf16>
    %c0_1 = arith.constant 0 : index
    %c0_2 = arith.constant 0 : index
    %1 = vector.load %arg3[%c0_1, %c0_2] : memref<32x32xbf16, #tpu.memory_space<vmem>>, vector<32x32xbf16>
    %cst = arith.constant dense<0.000000e+00> : vector<8x32xf32>
    %2 = tpu.matmul %0, %1, %cst {dimension_numbers = #tpu.dot_dimension_numbers<[1], [0], [0], [1], [0, 0, 1, 1], [], []>} : vector<8x32xbf16>, vector<32x32xbf16>, vector<8x32xf32> -> vector<8x32xf32>
    %c0_3 = arith.constant 0 : index
    %c0_4 = arith.constant 0 : index
    %3 = vector.load %arg4[%c0_3, %c0_4] : memref<1x32xf32, #tpu.memory_space<vmem>>, vector<1x32xf32>
    %4 = vector.broadcast %3 : vector<1x32xf32> to vector<8x32xf32>
    %5 = arith.addf %2, %4 : vector<8x32xf32>
    %cst_5 = arith.constant 0.000000e+00 : f32
    %6 = vector.broadcast %cst_5 : f32 to vector<8x32xf32>
    %7 = arith.maximumf %5, %6 : vector<8x32xf32>
    %8 = arith.truncf %7 : vector<8x32xf32> to vector<8x32xbf16>
    %c0_6 = arith.constant 0 : index
    %c0_7 = arith.constant 0 : index
    %9 = vector.load %arg5[%c0_6, %c0_7] : memref<32x32xbf16, #tpu.memory_space<vmem>>, vector<32x32xbf16>
    %cst_8 = arith.constant dense<0.000000e+00> : vector<8x32xf32>
    %10 = tpu.matmul %8, %9, %cst_8 {dimension_numbers = #tpu.dot_dimension_numbers<[1], [0], [0], [1], [0, 0, 1, 1], [], []>} : vector<8x32xbf16>, vector<32x32xbf16>, vector<8x32xf32> -> vector<8x32xf32>
    %c0_9 = arith.constant 0 : index
    %c0_10 = arith.constant 0 : index
    %11 = vector.load %arg6[%c0_9, %c0_10] : memref<1x32xf32, #tpu.memory_space<vmem>>, vector<1x32xf32>
    %12 = vector.broadcast %11 : vector<1x32xf32> to vector<8x32xf32>
    %13 = arith.addf %10, %12 : vector<8x32xf32>
    %cst_11 = arith.constant 0.000000e+00 : f32
    %14 = vector.broadcast %cst_11 : f32 to vector<8x32xf32>
    %15 = arith.maximumf %13, %14 : vector<8x32xf32>
    %16 = arith.truncf %15 : vector<8x32xf32> to vector<8x32xbf16>
    %c0_12 = arith.constant 0 : index
    %c0_13 = arith.constant 0 : index
    %17 = vector.load %arg7[%c0_12, %c0_13] : memref<32x128xbf16, #tpu.memory_space<vmem>>, vector<32x128xbf16>
    %cst_14 = arith.constant dense<0.000000e+00> : vector<8x128xf32>
    %18 = tpu.matmul %16, %17, %cst_14 {dimension_numbers = #tpu.dot_dimension_numbers<[1], [0], [0], [1], [0, 0, 1, 1], [], []>} : vector<8x32xbf16>, vector<32x128xbf16>, vector<8x128xf32> -> vector<8x128xf32>
    %c0_15 = arith.constant 0 : index
    %c0_16 = arith.constant 0 : index
    %19 = vector.load %arg8[%c0_15, %c0_16] : memref<1x128xf32, #tpu.memory_space<vmem>>, vector<1x128xf32>
    %20 = vector.broadcast %19 : vector<1x128xf32> to vector<8x128xf32>
    %21 = arith.addf %18, %20 : vector<8x128xf32>
    %cst_17 = arith.constant dense<0xFF800000> : vector<8xf32>
    %22 = vector.multi_reduction <maximumf>, %21, %cst_17 [1] : vector<8x128xf32> to vector<8xf32>
    %23 = vector.shape_cast %22 : vector<8xf32> to vector<8x1xf32>
    %24 = vector.broadcast %23 : vector<8x1xf32> to vector<8x128xf32>
    %25 = arith.subf %21, %24 : vector<8x128xf32>
    %26 = math.exp %25 : vector<8x128xf32>
    %cst_18 = arith.constant dense<0.000000e+00> : vector<8xf32>
    %27 = vector.multi_reduction <add>, %26, %cst_18 [1] : vector<8x128xf32> to vector<8xf32>
    %28 = vector.shape_cast %27 : vector<8xf32> to vector<8x1xf32>
    %29 = tpu.reciprocal %28 {approx = true} : vector<8x1xf32> -> vector<8x1xf32>
    %30 = vector.broadcast %29 : vector<8x1xf32> to vector<8x128xf32>
    %31 = arith.mulf %26, %30 : vector<8x128xf32>
    %32 = arith.truncf %31 : vector<8x128xf32> to vector<8x128xbf16>
    %c0_19 = arith.constant 0 : index
    %c0_20 = arith.constant 0 : index
    %33 = vector.load %arg9[%c0_19, %c0_20] : memref<8x128xbf16, #tpu.memory_space<vmem>>, vector<8x128xbf16>
    tpu.vector_store %arg9[%c0_19, %c0_20], %32 {strides = array<i32>} : memref<8x128xbf16, #tpu.memory_space<vmem>>, vector<8x128xbf16>,
    %c0_21 = arith.constant 0 : index
    %c0_22 = arith.constant 0 : index
    %34 = vector.load %arg2[%c0_21, %c0_22] : memref<8x1xi32, #tpu.memory_space<vmem>>, vector<8x1xi32>
    %35 = tpu.iota {dimensions = array<i32: 1>} : vector<8x128xi32>
    %36 = vector.broadcast %34 : vector<8x1xi32> to vector<8x128xi32>
    %37 = arith.cmpi eq, %35, %36 : vector<8x128xi32>
    %cst_23 = arith.constant 0.000000e+00 : f32
    %38 = vector.broadcast %cst_23 : f32 to vector<8x128xf32>
    %39 = arith.select %37, %25, %38 : vector<8x128xi1>, vector<8x128xf32>
    %cst_24 = arith.constant dense<0.000000e+00> : vector<8xf32>
    %40 = vector.multi_reduction <add>, %39, %cst_24 [1] : vector<8x128xf32> to vector<8xf32>
    %41 = vector.shape_cast %40 : vector<8xf32> to vector<8x1xf32>
    %cst_25 = arith.constant 0.000000e+00 : f32
    %42 = vector.broadcast %cst_25 : f32 to vector<8x128xf32>
    %43 = arith.select %37, %26, %42 : vector<8x128xi1>, vector<8x128xf32>
    %cst_26 = arith.constant dense<0.000000e+00> : vector<8xf32>
    %44 = vector.multi_reduction <add>, %43, %cst_26 [1] : vector<8x128xf32> to vector<8xf32>
    %45 = vector.shape_cast %44 : vector<8xf32> to vector<8x1xf32>
    %46 = math.log %28 : vector<8x1xf32>
    %47 = arith.subf %46, %41 : vector<8x1xf32>
    %48 = arith.divf %45, %28 : vector<8x1xf32>
    %cst_27 = arith.constant 1.000000e+00 : f32
    %49 = vector.broadcast %cst_27 : f32 to vector<8x1xf32>
    %50 = arith.subf %49, %48 : vector<8x1xf32>
    %cst_28 = arith.constant 1.000000e+00 : f32
    %51 = vector.broadcast %cst_28 : f32 to vector<8x1xf32>
    %52 = arith.subf %51, %48 : vector<8x1xf32>
    %53 = arith.mulf %50, %52 : vector<8x1xf32>
    %54 = arith.mulf %53, %47 : vector<8x1xf32>
    %c8_i32 = arith.constant 8 : i32
    %55 = arith.muli %arg0, %c8_i32 : i32
    %56 = tpu.iota {dimensions = array<i32: 0>} : vector<8x1xi32>
    %57 = vector.broadcast %55 : i32 to vector<8x1xi32>
    %58 = arith.addi %57, %56 : vector<8x1xi32>
    %c12_i32 = arith.constant 12 : i32
    %59 = vector.broadcast %c12_i32 : i32 to vector<8x1xi32>
    %60 = arith.cmpi slt, %58, %59 : vector<8x1xi32>
    %cst_29 = arith.constant 0.000000e+00 : f32
    %61 = vector.broadcast %cst_29 : f32 to vector<8x1xf32>
    %62 = arith.select %60, %54, %61 : vector<8x1xi1>, vector<8x1xf32>
    %cst_30 = arith.constant dense<0.000000e+00> : vector<1xf32>
    %63 = vector.multi_reduction <add>, %62, %cst_30 [0] : vector<8x1xf32> to vector<1xf32>
    %64 = vector.shape_cast %63 : vector<1xf32> to vector<1x1xf32>
    %65 = vector.shape_cast %64 : vector<1x1xf32> to vector<1x1x1xf32>
    %c0_31 = arith.constant 0 : index
    %c0_32 = arith.constant 0 : index
    %c0_33 = arith.constant 0 : index
    %66 = vector.load %arg10[%c0_31, %c0_32, %c0_33] : memref<1x1x1xf32, #tpu.memory_space<vmem>>, vector<1x1x1xf32>
    tpu.vector_store %arg10[%c0_31, %c0_32, %c0_33], %65 {strides = array<i32>} : memref<1x1x1xf32, #tpu.memory_space<vmem>>, vector<1x1x1xf32>,
    return
  }
  func.func @transform_0(%arg0: i32) -> (i32, i32) {
    %c0_i32 = arith.constant 0 : i32
    %c0_i32_0 = arith.constant 0 : i32
    return %arg0, %c0_i32 : i32, i32
  }
  func.func @transform_1(%arg0: i32) -> (i32, i32) {
    %c0_i32 = arith.constant 0 : i32
    %c0_i32_0 = arith.constant 0 : i32
    return %arg0, %c0_i32 : i32, i32
  }
  func.func @transform_2(%arg0: i32) -> (i32, i32) {
    %c0_i32 = arith.constant 0 : i32
    %c0_i32_0 = arith.constant 0 : i32
    %c0_i32_1 = arith.constant 0 : i32
    return %c0_i32, %c0_i32_0 : i32, i32
  }
  func.func @transform_3(%arg0: i32) -> (i32, i32) {
    %c0_i32 = arith.constant 0 : i32
    %c0_i32_0 = arith.constant 0 : i32
    %c0_i32_1 = arith.constant 0 : i32
    return %c0_i32, %c0_i32_0 : i32, i32
  }
  func.func @transform_4(%arg0: i32) -> (i32, i32) {
    %c0_i32 = arith.constant 0 : i32
    %c0_i32_0 = arith.constant 0 : i32
    %c0_i32_1 = arith.constant 0 : i32
    return %c0_i32, %c0_i32_0 : i32, i32
  }
  func.func @transform_5(%arg0: i32) -> (i32, i32) {
    %c0_i32 = arith.constant 0 : i32
    %c0_i32_0 = arith.constant 0 : i32
    %c0_i32_1 = arith.constant 0 : i32
    return %c0_i32, %c0_i32_0 : i32, i32
  }
  func.func @transform_6(%arg0: i32) -> (i32, i32) {
    %c0_i32 = arith.constant 0 : i32
    %c0_i32_0 = arith.constant 0 : i32
    %c0_i32_1 = arith.constant 0 : i32
    return %c0_i32, %c0_i32_0 : i32, i32
  }
  func.func @transform_7(%arg0: i32) -> (i32, i32) {
    %c0_i32 = arith.constant 0 : i32
    %c0_i32_0 = arith.constant 0 : i32
    %c0_i32_1 = arith.constant 0 : i32
    return %c0_i32, %c0_i32_0 : i32, i32
  }
  func.func @transform_8(%arg0: i32) -> (i32, i32) {
    %c0_i32 = arith.constant 0 : i32
    %c0_i32_0 = arith.constant 0 : i32
    return %arg0, %c0_i32 : i32, i32
  }
  func.func @transform_9(%arg0: i32) -> (i32, i32, i32) {
    %c0_i32 = arith.constant 0 : i32
    %c0_i32_0 = arith.constant 0 : i32
    %c0_i32_1 = arith.constant 0 : i32
    return %arg0, %c0_i32, %c0_i32_0 : i32, i32, i32
  }
}

</mosaic_0001>

<llo_original>
// kernel: tpu_custom_call.1
$region0: #{tpu_custom_call.1}
  #allocation0 [shape = 'u32[]', space=smem, size = 0x4, offset = 0x4, fixed_abs, tag = 'smem constant byte address 0x4 - core index']
  #allocation1 [shape = 'u32[144,128]{1,0:T(1,128)}', space=vmem, size = 0x12000, scoped, tag = 'internal scratch']
  %s0 = inlined_call_operand.hbm [shape: bf16[12,32], index: 0, kind: input, shape index: {}]
  %s1 = inlined_call_operand.vmem [shape: s32[12,1], index: 1, kind: input, shape index: {}]
  %s2 = inlined_call_operand.vmem [shape: bf16[32,32], index: 2, kind: input, shape index: {}]
  %s3 = inlined_call_operand.hbm [shape: f32[1,32], index: 3, kind: input, shape index: {}]
  %s4 = inlined_call_operand.vmem [shape: bf16[32,32], index: 4, kind: input, shape index: {}]
  %s5 = inlined_call_operand.vmem [shape: f32[1,32], index: 5, kind: input, shape index: {}]
  %s6 = inlined_call_operand.hbm [shape: bf16[32,128], index: 6, kind: input, shape index: {}]
  %s7 = inlined_call_operand.vmem [shape: f32[1,128], index: 7, kind: input, shape index: {}]
  %s8 = inlined_call_operand.hbm [shape: bf16[12,128], index: 8, kind: output, shape index: {0}]
  %s9 = inlined_call_operand.vmem [shape: f32[2,1,1], index: 9, kind: output, shape index: {1}]
  %10 = xla_tuple %s8, %s9
  %s11 = sld [smem:[#allocation0]]
  $region85: #{tpu_custom_call.1} parent=0
    _
  %s13 = ssub.s32 1, %s11
  %s14 = scalar_select 0, %s13, %s11
  $region1: #{tpu_custom_call.1} parent=0
    #allocation2 [shape = 'u8[4096]{0}', space=vmem, size = 0x1000, scoped, tag = 'input window, operand 0']
    #allocation3 [shape = 's32[2]{0}', space=sflag, size = 0x8, scoped, tag = 'scoped memory for tpu_custom_call.1']
    #allocation4 [shape = 's32[2]{0}', space=sflag, size = 0x8, scoped, tag = 'scoped memory for tpu_custom_call.1']
    #allocation5 [shape = 'u8[512]{0}', space=vmem, size = 0x400, scoped, tag = 'input window, operand 3, single buffered']
    #allocation6 [shape = 's32[1]{0}', space=sflag, size = 0x4, scoped, tag = 'scoped memory for tpu_custom_call.1']
    #allocation7 [shape = 'u8[8192]{0}', space=vmem, size = 0x2000, scoped, tag = 'input window, operand 6, single buffered']
    #allocation8 [shape = 'u8[4096]{0}', space=vmem, size = 0x1000, scoped, tag = 'output window, operand 0']
    %15 = vsyncpa [#allocation3], 0
    %s16 = scalar_lea.sflag [#allocation3], 1
    %17 = vsyncpa %s16, 0
    %18 = vsyncpa [#allocation6], 0
    %19 = vsyncpa [#allocation4], 0
    %s20 = scalar_lea.sflag [#allocation4], 1
    %21 = vsyncpa %s20, 0
    loop: start=0, step=1, limit=4
    $region2: #{tpu_custom_call.1} parent=1 // loop_pre_header
      _
    $region3: #{tpu_custom_call.1} parent=1 // loop_header
      %s23 = sphi 0, %s27
      %p24 = scmp.ge.s32.totalorder %s23, 4
      %s33 = sphi 0, %s35
      %s36 = sphi 0, %s33
      %s37 = sphi 0, %s36
      %s53 = sphi 0, %s37
      %s59 = sphi 0, %s61
      %s62 = sphi 0, %s59
      %s63 = sphi 0, %s62
      %s79 = sphi 0, %s63
      %s83 = sphi 0, %s83
      %s85 = sphi 0, %s83
      %s86 = sphi 0, %s85
      %s100 = sphi 0, %s86
      %s104 = sphi 0, %s104
      %s106 = sphi 0, %s104
      %s107 = sphi 0, %s106
      %s121 = sphi 0, %s107
      %s125 = sphi 0, %s125
      %s127 = sphi 0, %s125
      %s128 = sphi 0, %s127
      %s142 = sphi 0, %s128
      %s146 = sphi 0, %s146
      %s148 = sphi 0, %s146
      %s149 = sphi 0, %s148
      %s163 = sphi 0, %s149
      %s167 = sphi 0, %s167
      %s169 = sphi 0, %s167
      %s170 = sphi 0, %s169
      %s184 = sphi 0, %s170
      %s188 = sphi 0, %s188
      %s190 = sphi 0, %s188
      %s191 = sphi 0, %s190
      %s205 = sphi 0, %s191
      %s211 = sphi 0, %s213
      %s214 = sphi 0, %s211
      %s215 = sphi 0, %s214
      %s231 = sphi 0, %s215
      %s237 = sphi 0, %s239
      %s240 = sphi 0, %s237
      %s241 = sphi 0, %s240
      %s257 = sphi 0, %s241
    $region4: #{tpu_custom_call.1} parent=1 // loop_header_branch
      %26 = sbr.rel (%p24) target = $region8
    $region5: #{tpu_custom_call.1} parent=1 // loop_body
      %s28 = ssub.s32 %s23, 1
      %s29 = ssub.s32 %s23, 2
      %s30 = sadd.s32 %s23, 1
      %s31 = ssub.s32 %s23, %s30
      %p32 = scmp.eq.s32.totalorder %s31, 0
      %s34 = sadd.s32 %s33, 1
      %s35 = scalar_select %p32, %s33, %s34
      %p38 = pneg %p32
      %p39 = scmp.eq.s32.totalorder %s23, 1
      %p40 = por %p38, %p39
      %p41 = scmp.ne.s32.totalorder %s33, %s36
      %p42 = scmp.eq.s32.totalorder %s23, 0
      %p43 = por %p41, %p42
      %p44 = scmp.ne.s32.totalorder %s33, %s36
      %p45 = scmp.eq.s32.totalorder %s28, 1
      %p46 = por %p44, %p45
      %p47 = scmp.ne.s32.totalorder %s36, %s37
      %p48 = scmp.eq.s32.totalorder %s28, 0
      %p49 = por %p47, %p48
      %p50 = scmp.ne.s32.totalorder %s36, %s37
      %p51 = scmp.eq.s32.totalorder %s29, 1
      %p52 = por %p50, %p51
      %p54 = scmp.ne.s32.totalorder %s37, %s53
      %p55 = scmp.eq.s32.totalorder %s29, 0
      %p56 = por %p54, %p55
      %s57 = ssub.s32 %s23, %s30
      %p58 = scmp.eq.s32.totalorder %s57, 0
      %s60 = sadd.s32 %s59, 1
      %s61 = scalar_select %p58, %s59, %s60
      %p64 = pneg %p58
      %p65 = scmp.eq.s32.totalorder %s23, 1
      %p66 = por %p64, %p65
      %p67 = scmp.ne.s32.totalorder %s59, %s62
      %p68 = scmp.eq.s32.totalorder %s23, 0
      %p69 = por %p67, %p68
      %p70 = scmp.ne.s32.totalorder %s59, %s62
      %p71 = scmp.eq.s32.totalorder %s28, 1
      %p72 = por %p70, %p71
      %p73 = scmp.ne.s32.totalorder %s62, %s63
      %p74 = scmp.eq.s32.totalorder %s28, 0
      %p75 = por %p73, %p74
      %p76 = scmp.ne.s32.totalorder %s62, %s63
      %p77 = scmp.eq.s32.totalorder %s29, 1
      %p78 = por %p76, %p77
      %p80 = scmp.ne.s32.totalorder %s63, %s79
      %p81 = scmp.eq.s32.totalorder %s29, 0
      %p82 = por %p80, %p81
      %s84 = sadd.s32 %s83, 1
      %p87 = scmp.eq.s32.totalorder %s23, 1
      %p88 = scmp.ne.s32.totalorder %s83, %s85
      %p89 = scmp.eq.s32.totalorder %s23, 0
      %p90 = por %p88, %p89
      %p91 = scmp.ne.s32.totalorder %s83, %s85
      %p92 = scmp.eq.s32.totalorder %s28, 1
      %p93 = por %p91, %p92
      %p94 = scmp.ne.s32.totalorder %s85, %s86
      %p95 = scmp.eq.s32.totalorder %s28, 0
      %p96 = por %p94, %p95
      %p97 = scmp.ne.s32.totalorder %s85, %s86
      %p98 = scmp.eq.s32.totalorder %s29, 1
      %p99 = por %p97, %p98
      %p101 = scmp.ne.s32.totalorder %s86, %s100
      %p102 = scmp.eq.s32.totalorder %s29, 0
      %p103 = por %p101, %p102
      %s105 = sadd.s32 %s104, 1
      %p108 = scmp.eq.s32.totalorder %s23, 1
      %p109 = scmp.ne.s32.totalorder %s104, %s106
      %p110 = scmp.eq.s32.totalorder %s23, 0
      %p111 = por %p109, %p110
      %p112 = scmp.ne.s32.totalorder %s104, %s106
      %p113 = scmp.eq.s32.totalorder %s28, 1
      %p114 = por %p112, %p113
      %p115 = scmp.ne.s32.totalorder %s106, %s107
      %p116 = scmp.eq.s32.totalorder %s28, 0
      %p117 = por %p115, %p116
      %p118 = scmp.ne.s32.totalorder %s106, %s107
      %p119 = scmp.eq.s32.totalorder %s29, 1
      %p120 = por %p118, %p119
      %p122 = scmp.ne.s32.totalorder %s107, %s121
      %p123 = scmp.eq.s32.totalorder %s29, 0
      %p124 = por %p122, %p123
      %s126 = sadd.s32 %s125, 1
      %p129 = scmp.eq.s32.totalorder %s23, 1
      %p130 = scmp.ne.s32.totalorder %s125, %s127
      %p131 = scmp.eq.s32.totalorder %s23, 0
      %p132 = por %p130, %p131
      %p133 = scmp.ne.s32.totalorder %s125, %s127
      %p134 = scmp.eq.s32.totalorder %s28, 1
      %p135 = por %p133, %p134
      %p136 = scmp.ne.s32.totalorder %s127, %s128
      %p137 = scmp.eq.s32.totalorder %s28, 0
      %p138 = por %p136, %p137
      %p139 = scmp.ne.s32.totalorder %s127, %s128
      %p140 = scmp.eq.s32.totalorder %s29, 1
      %p141 = por %p139, %p140
      %p143 = scmp.ne.s32.totalorder %s128, %s142
      %p144 = scmp.eq.s32.totalorder %s29, 0
      %p145 = por %p143, %p144
      %s147 = sadd.s32 %s146, 1
      %p150 = scmp.eq.s32.totalorder %s23, 1
      %p151 = scmp.ne.s32.totalorder %s146, %s148
      %p152 = scmp.eq.s32.totalorder %s23, 0
      %p153 = por %p151, %p152
      %p154 = scmp.ne.s32.totalorder %s146, %s148
      %p155 = scmp.eq.s32.totalorder %s28, 1
      %p156 = por %p154, %p155
      %p157 = scmp.ne.s32.totalorder %s148, %s149
      %p158 = scmp.eq.s32.totalorder %s28, 0
      %p159 = por %p157, %p158
      %p160 = scmp.ne.s32.totalorder %s148, %s149
      %p161 = scmp.eq.s32.totalorder %s29, 1
      %p162 = por %p160, %p161
      %p164 = scmp.ne.s32.totalorder %s149, %s163
      %p165 = scmp.eq.s32.totalorder %s29, 0
      %p166 = por %p164, %p165
      %s168 = sadd.s32 %s167, 1
      %p171 = scmp.eq.s32.totalorder %s23, 1
      %p172 = scmp.ne.s32.totalorder %s167, %s169
      %p173 = scmp.eq.s32.totalorder %s23, 0
      %p174 = por %p172, %p173
      %p175 = scmp.ne.s32.totalorder %s167, %s169
      %p176 = scmp.eq.s32.totalorder %s28, 1
      %p177 = por %p175, %p176
      %p178 = scmp.ne.s32.totalorder %s169, %s170
      %p179 = scmp.eq.s32.totalorder %s28, 0
      %p180 = por %p178, %p179
      %p181 = scmp.ne.s32.totalorder %s169, %s170
      %p182 = scmp.eq.s32.totalorder %s29, 1
      %p183 = por %p181, %p182
      %p185 = scmp.ne.s32.totalorder %s170, %s184
      %p186 = scmp.eq.s32.totalorder %s29, 0
      %p187 = por %p185, %p186
      %s189 = sadd.s32 %s188, 1
      %p192 = scmp.eq.s32.totalorder %s23, 1
      %p193 = scmp.ne.s32.totalorder %s188, %s190
      %p194 = scmp.eq.s32.totalorder %s23, 0
      %p195 = por %p193, %p194
      %p196 = scmp.ne.s32.totalorder %s188, %s190
      %p197 = scmp.eq.s32.totalorder %s28, 1
      %p198 = por %p196, %p197
      %p199 = scmp.ne.s32.totalorder %s190, %s191
      %p200 = scmp.eq.s32.totalorder %s28, 0
      %p201 = por %p199, %p200
      %p202 = scmp.ne.s32.totalorder %s190, %s191
      %p203 = scmp.eq.s32.totalorder %s29, 1
      %p204 = por %p202, %p203
      %p206 = scmp.ne.s32.totalorder %s191, %s205
      %p207 = scmp.eq.s32.totalorder %s29, 0
      %p208 = por %p206, %p207
      %s209 = ssub.s32 %s23, %s30
      %p210 = scmp.eq.s32.totalorder %s209, 0
      %s212 = sadd.s32 %s211, 1
      %s213 = scalar_select %p210, %s211, %s212
      %p216 = pneg %p210
      %p217 = scmp.eq.s32.totalorder %s23, 1
      %p218 = por %p216, %p217
      %p219 = scmp.ne.s32.totalorder %s211, %s214
      %p220 = scmp.eq.s32.totalorder %s23, 0
      %p221 = por %p219, %p220
      %p222 = scmp.ne.s32.totalorder %s211, %s214
      %p223 = scmp.eq.s32.totalorder %s28, 1
      %p224 = por %p222, %p223
      %p225 = scmp.ne.s32.totalorder %s214, %s215
      %p226 = scmp.eq.s32.totalorder %s28, 0
      %p227 = por %p225, %p226
      %p228 = scmp.ne.s32.totalorder %s214, %s215
      %p229 = scmp.eq.s32.totalorder %s29, 1
      %p230 = por %p228, %p229
      %p232 = scmp.ne.s32.totalorder %s215, %s231
      %p233 = scmp.eq.s32.totalorder %s29, 0
      %p234 = por %p232, %p233
      %s235 = ssub.s32 %s23, %s30
      %p236 = scmp.eq.s32.totalorder %s235, 0
      %s238 = sadd.s32 %s237, 1
      %s239 = scalar_select %p236, %s237, %s238
      %p242 = pneg %p236
      %p243 = scmp.eq.s32.totalorder %s23, 1
      %p244 = por %p242, %p243
      %p245 = scmp.ne.s32.totalorder %s237, %s240
      %p246 = scmp.eq.s32.totalorder %s23, 0
      %p247 = por %p245, %p246
      %p248 = scmp.ne.s32.totalorder %s237, %s240
      %p249 = scmp.eq.s32.totalorder %s28, 1
      %p250 = por %p248, %p249
      %p251 = scmp.ne.s32.totalorder %s240, %s241
      %p252 = scmp.eq.s32.totalorder %s28, 0
      %p253 = por %p251, %p252
      %p254 = scmp.ne.s32.totalorder %s240, %s241
      %p255 = scmp.eq.s32.totalorder %s29, 1
      %p256 = por %p254, %p255
      %p258 = scmp.ne.s32.totalorder %s241, %s257
      %p259 = scmp.eq.s32.totalorder %s29, 0
      %p260 = por %p258, %p259
      %p261 = scmp.le.s32.totalorder 1, %s23
      %p262 = scmp.lt.s32.totalorder %s23, 3
      %p263 = pnand %p261, %p262
      %p264 = pneg %p263
      // Predicated region
      $region9: #{tpu_custom_call.1} parent=5 // pred_check
        _
      $region10: #{tpu_custom_call.1} parent=5 // pred_check_branch
        %266 = sbr.rel (%p263) target = $region12
      $region11: #{tpu_custom_call.1} parent=5 // pred_region
        %s267 = ssub.s32 %s23, 1
        // Predicated region
        $region13: #{tpu_custom_call.1} parent=11 // pred_check
          %p268 = pneg %p96
        $region14: #{tpu_custom_call.1} parent=11 // pred_check_branch
          %270 = sbr.rel (%p268) target = $region16
        $region15: #{tpu_custom_call.1} parent=11 // pred_region
          _
        $region16: #{tpu_custom_call.1} parent=11 // pred_fallthru
          _
        // Predicated region
        $region17: #{tpu_custom_call.1} parent=11 // pred_check
          %p271 = pneg %p117
        $region18: #{tpu_custom_call.1} parent=11 // pred_check_branch
          %273 = sbr.rel (%p271) target = $region20
        $region19: #{tpu_custom_call.1} parent=11 // pred_region
          %s275 = ssub.s32 16, 16
          %276 = vsyncadd [#allocation6], %s275
          %s278 = sshll.u32 [#allocation5], 4
          %s279 = int_to_ptr.vmem [resolvable:$true] %s278
          %281 = dma.hbm_to_vmem [thread:$0]  %s3, 16, %s279, [#allocation6]
        $region20: #{tpu_custom_call.1} parent=11 // pred_fallthru
          _
        // Predicated region
        $region21: #{tpu_custom_call.1} parent=11 // pred_check
          %p282 = pneg %p138
        $region22: #{tpu_custom_call.1} parent=11 // pred_check_branch
          %284 = sbr.rel (%p282) target = $region24
        $region23: #{tpu_custom_call.1} parent=11 // pred_region
          _
        $region24: #{tpu_custom_call.1} parent=11 // pred_fallthru
          _
        // Predicated region
        $region25: #{tpu_custom_call.1} parent=11 // pred_check
          %p285 = pneg %p159
        $region26: #{tpu_custom_call.1} parent=11 // pred_check_branch
          %287 = sbr.rel (%p285) target = $region28
        $region27: #{tpu_custom_call.1} parent=11 // pred_region
          _
        $region28: #{tpu_custom_call.1} parent=11 // pred_fallthru
          _
        // Predicated region
        $region29: #{tpu_custom_call.1} parent=11 // pred_check
          %p288 = pneg %p180
        $region30: #{tpu_custom_call.1} parent=11 // pred_check_branch
          %290 = sbr.rel (%p288) target = $region32
        $region31: #{tpu_custom_call.1} parent=11 // pred_region
          %s292 = ssub.s32 256, 256
          %293 = vsyncadd [#allocation6], %s292
          %s294 = sshll.u32 [#allocation7], 4
          %s295 = int_to_ptr.vmem [resolvable:$true] %s294
          %300 = dma.hbm_to_vmem [thread:$0]  %s6, 256, %s295, [#allocation6], 64, 64, 4
        $region32: #{tpu_custom_call.1} parent=11 // pred_fallthru
          _
        // Predicated region
        $region33: #{tpu_custom_call.1} parent=11 // pred_check
          %p301 = pneg %p201
        $region34: #{tpu_custom_call.1} parent=11 // pred_check_branch
          %303 = sbr.rel (%p301) target = $region36
        $region35: #{tpu_custom_call.1} parent=11 // pred_region
          _
        $region36: #{tpu_custom_call.1} parent=11 // pred_fallthru
          _
      $region12: #{tpu_custom_call.1} parent=5 // pred_fallthru
        _
      %p304 = scmp.lt.s32.totalorder %s23, 2
      // Predicated region
      $region37: #{tpu_custom_call.1} parent=5 // pred_check
        %p305 = pneg %p304
      $region38: #{tpu_custom_call.1} parent=5 // pred_check_branch
        %307 = sbr.rel (%p305) target = $region40
      $region39: #{tpu_custom_call.1} parent=5 // pred_region
        // Predicated region
        $region41: #{tpu_custom_call.1} parent=39 // pred_check
          %p308 = pneg %p43
        $region42: #{tpu_custom_call.1} parent=39 // pred_check_branch
          %310 = sbr.rel (%p308) target = $region44
        $region43: #{tpu_custom_call.1} parent=39 // pred_region
          %s311 = sand.u32 %s33, 1
          %s312 = scalar_lea.sflag [#allocation3], %s311
          %s313 = sand.u32 %s33, 1
          %s314 = smul.addr %s313, 4
          %s315 = scalar_lea.vmem [#allocation2], %s314
          %s317 = ssub.s32 64, 64
          %318 = vsyncadd %s312, %s317
          %s319 = smul.addr %s23, 64
          %s320 = scalar_lea.hbm %s0, %s319
          %s322 = sshll.u32 %s315, 4
          %s323 = int_to_ptr.vmem [resolvable:$true] %s322
          %325 = dma.hbm_to_vmem [thread:$0]  %s320, 64, %s323, %s312
        $region44: #{tpu_custom_call.1} parent=39 // pred_fallthru
          _
        // Predicated region
        $region45: #{tpu_custom_call.1} parent=39 // pred_check
          %p326 = pneg %p69
        $region46: #{tpu_custom_call.1} parent=39 // pred_check_branch
          %328 = sbr.rel (%p326) target = $region48
        $region47: #{tpu_custom_call.1} parent=39 // pred_region
          %p329 = scmp.lt.s32.totalorder %s23, 1
          %s330 = scalar_select %p329, %s23, 1
          %s331 = smul.addr %s330, 8
          %s332 = scalar_lea.vmem %s1, %s331
        $region48: #{tpu_custom_call.1} parent=39 // pred_fallthru
          _
      $region40: #{tpu_custom_call.1} parent=5 // pred_fallthru
        _
      %p333 = scmp.le.s32.totalorder 1, %s23
      %p334 = scmp.lt.s32.totalorder %s23, 3
      %p335 = pnand %p333, %p334
      %p336 = pneg %p335
      // Predicated region
      $region49: #{tpu_custom_call.1} parent=5 // pred_check
        _
      $region50: #{tpu_custom_call.1} parent=5 // pred_check_branch
        %338 = sbr.rel (%p335) target = $region52
      $region51: #{tpu_custom_call.1} parent=5 // pred_region
        %s339 = ssub.s32 %s23, 1
        %s340 = sand.u32 %s36, 1
        %s341 = scalar_lea.sflag [#allocation3], %s340
        %s342 = sand.u32 %s36, 1
        %s343 = smul.addr %s342, 4
        %s344 = scalar_lea.vmem [#allocation2], %s343
        // Predicated region
        $region53: #{tpu_custom_call.1} parent=51 // pred_check
          %p345 = pneg %p49
        $region54: #{tpu_custom_call.1} parent=51 // pred_check_branch
          %347 = sbr.rel (%p345) target = $region56
        $region55: #{tpu_custom_call.1} parent=51 // pred_region
          %348 = dma.done %s341, 64
        $region56: #{tpu_custom_call.1} parent=51 // pred_fallthru
          _
        // Predicated region
        $region57: #{tpu_custom_call.1} parent=51 // pred_check
          %p349 = pneg %p117
        $region58: #{tpu_custom_call.1} parent=51 // pred_check_branch
          %351 = sbr.rel (%p349) target = $region60
        $region59: #{tpu_custom_call.1} parent=51 // pred_region
          %352 = dma.done [#allocation6], 16
        $region60: #{tpu_custom_call.1} parent=51 // pred_fallthru
          _
        // Predicated region
        $region61: #{tpu_custom_call.1} parent=51 // pred_check
          %p353 = pneg %p180
        $region62: #{tpu_custom_call.1} parent=51 // pred_check_branch
          %355 = sbr.rel (%p353) target = $region64
        $region63: #{tpu_custom_call.1} parent=51 // pred_region
          %356 = dma.done [#allocation6], 256
        $region64: #{tpu_custom_call.1} parent=51 // pred_fallthru
          _
        %s357 = sand.u32 %s36, 1
        %s358 = scalar_lea.sflag [#allocation3], %s357
        %s359 = sand.u32 %s36, 1
        %s360 = smul.addr %s359, 4
        %s361 = scalar_lea.vmem [#allocation2], %s360
        %p362 = pneg %p49
        %p363 = pneg %p46
        %p364 = scmp.lt.s32.totalorder %s28, 1
        %s365 = scalar_select %p364, %s28, 1
        %s366 = smul.addr %s365, 8
        %s367 = scalar_lea.vmem %s1, %s366
        %p368 = pneg %p75
        %p369 = pneg %p72
        %p370 = pneg %p96
        %p371 = pneg %p93
        %p372 = pneg %p117
        %p373 = pneg %p114
        %p374 = pneg %p138
        %p375 = pneg %p135
        %p376 = pneg %p159
        %p377 = pneg %p156
        %p378 = pneg %p180
        %p379 = pneg %p177
        %p380 = pneg %p201
        %p381 = pneg %p198
        %p382 = pneg %p227
        %p383 = pneg %p224
        %s384 = sand.u32 %s214, 1
        %s385 = scalar_lea.sflag [#allocation4], %s384
        %s386 = sand.u32 %s214, 1
        %s387 = smul.addr %s386, 4
        %s388 = scalar_lea.vmem [#allocation8], %s387
        %p389 = pneg %p253
        %p390 = pneg %p250
        %p391 = scmp.lt.s32.totalorder %s28, 1
        %s392 = scalar_select %p391, %s28, 1
        %s393 = scalar_lea.vmem %s9, %s392
        %p394 = scmp.lt.s32.totalorder %s28, 1
        %s395 = scalar_select %p394, %s28, 1
        %s396 = smul.addr %s395, 8
        %s397 = scalar_lea.vmem %s1, %s396
        %p398 = scmp.lt.s32.totalorder %s28, 1
        %s399 = scalar_select %p398, %s28, 1
        %s400 = scalar_lea.vmem %s9, %s399
        %v402 = vld [vmem:[%s344] sm:$0xf]
        %v403 = vld [vmem:[%s2] sm:$0xf]
        %v404 = vld [vmem:[%s2 + $0x4] sm:$0xf]
        %v405 = vld [vmem:[%s2 + $0x8] sm:$0xf]
        %v406 = vld [vmem:[%s2 + $0xc] sm:$0xf]
        %v407 = vld [vmem:[#allocation5] sm:$0x1]
        %v409 = vlaneseq
        %v410 = vshrl.u32 %v409, 7
        %v411 = vsub.s32 0, %v410
        %v412 = vrot.slane %v407, %v411
        %v418 = vunpack.c.l.b16 %v403
        %v419 = vunpack.c.l.b16 %v404
        %v420 = vunpack.c.l.b16 %v405
        %v421 = vunpack.c.l.b16 %v406
        %v422 = vpack.c.b16 %v419, %v418
        %v423 = vpack.c.b16 %v421, %v420
        %vm426 = vcmask 261120
        %v428 = vsel %vm426, %v402, 0
        %430 = vmatprep.subr.bf16.mxu0 0
        %431 = vmatpush1.bf16.msra.mxu0 %v422
        %432 = vmatprep.subr.bf16.mxu0 0
        %433 = vmatpush1.bf16.msra.mxu0 %v423
        %434 = vmatprep.subr.bf16.mxu0 0
        %435 = vmatpush1.bf16.msra.mxu0 0
        %436 = vmatprep.subr.bf16.mxu0 0
        %437 = vmatpush1.bf16.msra.mxu0 0
        %438 = vmatprep.subr.bf16.mxu0 0
        %439 = vmatpush1.bf16.msra.mxu0 0
        %440 = vmatprep.subr.bf16.mxu0 0
        %441 = vmatpush1.bf16.msra.mxu0 0
        %442 = vmatprep.subr.bf16.mxu0 0
        %443 = vmatpush1.bf16.msra.mxu0 0
        %444 = vmatprep.subr.bf16.mxu0 0
        %445 = vmatpush1.bf16.msra.mxu0 0
        %446 = vmatprep.subr.bf16.mxu0 0
        %447 = vmatpush1.bf16.msra.mxu0 0
        %448 = vmatprep.subr.bf16.mxu0 0
        %449 = vmatpush1.bf16.msra.mxu0 0
        %450 = vmatprep.subr.bf16.mxu0 0
        %451 = vmatpush1.bf16.msra.mxu0 0
        %452 = vmatprep.subr.bf16.mxu0 0
        %453 = vmatpush1.bf16.msra.mxu0 0
        %454 = vmatprep.subr.bf16.mxu0 0
        %455 = vmatpush1.bf16.msra.mxu0 0
        %456 = vmatprep.subr.bf16.mxu0 0
        %457 = vmatpush1.bf16.msra.mxu0 0
        %458 = vmatprep.subr.bf16.mxu0 0
        %459 = vmatpush1.bf16.msra.mxu0 0
        %460 = vmatprep.subr.bf16.mxu0 0
        %461 = vmatpush1.bf16.msra.mxu0 0
        %462 = vmatprep.mubr.bf16.mxu0 0
        %463 = vmatmul.mubr.bf16.gmra.mrb[0].mxu0 %v428
        %v464 = vpop.f32.mrb[0].mxu0
        %v465 = vadd.f32 %v412, %v464
        %v466 = vpop.f32.mrb[0].mxu0
        %v467 = vpop.f32.mrb[0].mxu0
        %v468 = vpop.f32.mrb[0].mxu0
        %469 = vdwg.mxu0
        %v470 = vmax.f32 %v465, 0.0
        %v471 = vpack.c.bf16 %v470, %v470
        %v472 = vld [vmem:[%s4] sm:$0xf]
        %v473 = vld [vmem:[%s4 + $0x4] sm:$0xf]
        %v474 = vld [vmem:[%s4 + $0x8] sm:$0xf]
        %v475 = vld [vmem:[%s4 + $0xc] sm:$0xf]
        %v476 = vld [vmem:[%s5] sm:$0x1]
        %v478 = vlaneseq
        %v479 = vshrl.u32 %v478, 7
        %v480 = vsub.s32 0, %v479
        %v481 = vrot.slane %v476, %v480
        %v487 = vunpack.c.l.b16 %v472
        %v488 = vunpack.c.l.b16 %v473
        %v489 = vunpack.c.l.b16 %v474
        %v490 = vunpack.c.l.b16 %v475
        %v491 = vpack.c.b16 %v488, %v487
        %v492 = vpack.c.b16 %v490, %v489
        %v496 = vsel %vm426, %v471, 0
        %498 = vmatprep.subr.bf16.mxu0 0
        %499 = vmatpush1.bf16.msra.mxu0 %v491
        %500 = vmatprep.subr.bf16.mxu0 0
        %501 = vmatpush1.bf16.msra.mxu0 %v492
        %502 = vmatprep.subr.bf16.mxu0 0
        %503 = vmatpush1.bf16.msra.mxu0 0
        %504 = vmatprep.subr.bf16.mxu0 0
        %505 = vmatpush1.bf16.msra.mxu0 0
        %506 = vmatprep.subr.bf16.mxu0 0
        %507 = vmatpush1.bf16.msra.mxu0 0
        %508 = vmatprep.subr.bf16.mxu0 0
        %509 = vmatpush1.bf16.msra.mxu0 0
        %510 = vmatprep.subr.bf16.mxu0 0
        %511 = vmatpush1.bf16.msra.mxu0 0
        %512 = vmatprep.subr.bf16.mxu0 0
        %513 = vmatpush1.bf16.msra.mxu0 0
        %514 = vmatprep.subr.bf16.mxu0 0
        %515 = vmatpush1.bf16.msra.mxu0 0
        %516 = vmatprep.subr.bf16.mxu0 0
        %517 = vmatpush1.bf16.msra.mxu0 0
        %518 = vmatprep.subr.bf16.mxu0 0
        %519 = vmatpush1.bf16.msra.mxu0 0
        %520 = vmatprep.subr.bf16.mxu0 0
        %521 = vmatpush1.bf16.msra.mxu0 0
        %522 = vmatprep.subr.bf16.mxu0 0
        %523 = vmatpush1.bf16.msra.mxu0 0
        %524 = vmatprep.subr.bf16.mxu0 0
        %525 = vmatpush1.bf16.msra.mxu0 0
        %526 = vmatprep.subr.bf16.mxu0 0
        %527 = vmatpush1.bf16.msra.mxu0 0
        %528 = vmatprep.subr.bf16.mxu0 0
        %529 = vmatpush1.bf16.msra.mxu0 0
        %530 = vmatprep.mubr.bf16.mxu0 0
        %531 = vmatmul.mubr.bf16.gmra.mrb[0].mxu0 %v496
        %v532 = vpop.f32.mrb[0].mxu0
        %v533 = vadd.f32 %v481, %v532
        %v534 = vpop.f32.mrb[0].mxu0
        %v535 = vpop.f32.mrb[0].mxu0
        %v536 = vpop.f32.mrb[0].mxu0
        %537 = vdwg.mxu0
        %v538 = vmax.f32 %v533, 0.0
        %v539 = vpack.c.bf16 %v538, %v538
        %v540 = vld [vmem:[#allocation7] sm:$0xf]
        %v541 = vld [vmem:[#allocation7 + $0x4] sm:$0xf]
        %v542 = vld [vmem:[#allocation7 + $0x8] sm:$0xf]
        %v543 = vld [vmem:[#allocation7 + $0xc] sm:$0xf]
        %v544 = vld [vmem:[%s7] sm:$0x1]
        %v546 = vlaneseq
        %v547 = vshrl.u32 %v546, 7
        %v548 = vsub.s32 0, %v547
        %v549 = vrot.slane %v544, %v548
        %v555 = vunpack.c.l.b16 %v540
        %v556 = vunpack.c.l.b16 %v541
        %v557 = vunpack.c.l.b16 %v542
        %v558 = vunpack.c.l.b16 %v543
        %v559 = vpack.c.b16 %v556, %v555
        %v560 = vpack.c.b16 %v558, %v557
        %v564 = vsel %vm426, %v539, 0
        %566 = vmatprep.subr.bf16.mxu0 0
        %567 = vmatpush1.bf16.msra.mxu0 %v559
        %568 = vmatprep.subr.bf16.mxu0 0
        %569 = vmatpush1.bf16.msra.mxu0 %v560
        %570 = vmatprep.subr.bf16.mxu0 0
        %571 = vmatpush1.bf16.msra.mxu0 0
        %572 = vmatprep.subr.bf16.mxu0 0
        %573 = vmatpush1.bf16.msra.mxu0 0
        %574 = vmatprep.subr.bf16.mxu0 0
        %575 = vmatpush1.bf16.msra.mxu0 0
        %576 = vmatprep.subr.bf16.mxu0 0
        %577 = vmatpush1.bf16.msra.mxu0 0
        %578 = vmatprep.subr.bf16.mxu0 0
        %579 = vmatpush1.bf16.msra.mxu0 0
        %580 = vmatprep.subr.bf16.mxu0 0
        %581 = vmatpush1.bf16.msra.mxu0 0
        %582 = vmatprep.subr.bf16.mxu0 0
        %583 = vmatpush1.bf16.msra.mxu0 0
        %584 = vmatprep.subr.bf16.mxu0 0
        %585 = vmatpush1.bf16.msra.mxu0 0
        %586 = vmatprep.subr.bf16.mxu0 0
        %587 = vmatpush1.bf16.msra.mxu0 0
        %588 = vmatprep.subr.bf16.mxu0 0
        %589 = vmatpush1.bf16.msra.mxu0 0
        %590 = vmatprep.subr.bf16.mxu0 0
        %591 = vmatpush1.bf16.msra.mxu0 0
        %592 = vmatprep.subr.bf16.mxu0 0
        %593 = vmatpush1.bf16.msra.mxu0 0
        %594 = vmatprep.subr.bf16.mxu0 0
        %595 = vmatpush1.bf16.msra.mxu0 0
        %596 = vmatprep.subr.bf16.mxu0 0
        %597 = vmatpush1.bf16.msra.mxu0 0
        %598 = vmatprep.mubr.bf16.mxu0 0
        %599 = vmatmul.mubr.bf16.gmra.mrb[0].mxu0 %v564
        %v600 = vpop.f32.mrb[0].mxu0
        %v601 = vadd.f32 %v549, %v600
        %v602 = vpop.f32.mrb[0].mxu0
        %v603 = vpop.f32.mrb[0].mxu0
        %v604 = vpop.f32.mrb[0].mxu0
        %605 = vdwg.mxu0
        %606 = vmax.xlane.f32.xlu0 %v601
        %v607 = vpop.xlane.xlu0 %606
        %v608 = vsub.f32 %v601, %v607
        %v609 = vmul.f32 %v608, 1.442695
        %v610 = vpow.pop %v609
        %611 = vadd.xlane.f32.xlu0 %v610
        %v612 = vpop.xlane.xlu0 %611
        %v613 = vrcp.pop %v612
        %v614 = vmul.f32 %v610, %v613
        %v615 = vpack.c.bf16 %v614, %v614
        %616 = vst [vmem:[%s388] sm:$0xf] %v615
        %v617 = vld [vmem:[%s397] sm:$0xff]
        %v618 = vlaneseq
        %v619 = vand.u32 %v618, 127
        %620 = vset.pattern.permute.xlu0 0
        %621 = vperm.xlu0 %620, %v617
        %v622 = vpop.permute.xlu0 %621
        %vm623 = vcmp.eq.s32.totalorder %v619, %v622
        %v624 = vsel %vm623, %v608, 0.0
        %625 = vadd.xlane.f32.xlu0 %v624
        %v626 = vpop.xlane.xlu0 %625
        %v627 = vsel %vm623, %v610, 0.0
        %628 = vadd.xlane.f32.xlu0 %v627
        %v629 = vpop.xlane.xlu0 %628
        %v630 = vlog2.pop %v612
        %v631 = vmul.f32 %v630, 0.6931472
        %v632 = vsub.f32 %v631, %v626
        %v633 = vrcp.pop %v612
        %v634 = vmul.f32 %v629, %v633
        %v635 = vsub.f32 1.0, %v634
        %v636 = vmul.f32 %v635, %v635
        %v637 = vmul.f32 %v636, %v632
        %s638 = smul.u32 %s28, 8
        %v639 = vlaneseq
        %v640 = vshrl.u32 %v639, 7
        %v641 = vstv %s638
        %v642 = vadd.s32 %v641, %v640
        %vm643 = vcmp.lt.s32.totalorder %v642, 12
        %v644 = vsel %vm643, %v637, 0.0
        %v645 = vrot.slane %v644, 4
        %v646 = vadd.f32 %v644, %v645
        %v647 = vrot.slane %v646, 2
        %v648 = vadd.f32 %v646, %v647
        %v649 = vrot.slane %v648, 1
        %v650 = vadd.f32 %v648, %v649
        %vm651 = vcmask 0
        %652 = vst.msk [vmem:[%s400] sm:$0x1] %vm651, %v650
        %s653 = sand.u32 %s214, 1
        %s654 = scalar_lea.sflag [#allocation4], %s653
        %s655 = sand.u32 %s214, 1
        %s656 = smul.addr %s655, 4
        %s657 = scalar_lea.vmem [#allocation8], %s656
        %p658 = scmp.lt.s32.totalorder %s28, 1
        %s659 = scalar_select %p658, %s28, 1
        %s660 = scalar_lea.vmem %s9, %s659
        // Predicated region
        $region65: #{tpu_custom_call.1} parent=51 // pred_check
          %p661 = pneg %p224
        $region66: #{tpu_custom_call.1} parent=51 // pred_check_branch
          %663 = sbr.rel (%p661) target = $region68
        $region67: #{tpu_custom_call.1} parent=51 // pred_region
          %s665 = ssub.s32 64, 64
          %666 = vsyncadd %s654, %s665
          %s667 = smul.addr %s28, 64
          %s668 = scalar_lea.hbm %s8, %s667
          %s670 = sshll.u32 %s657, 4
          %s671 = int_to_ptr.vmem [resolvable:$true] %s670
          %673 = dma.vmem_to_hbm [thread:$0]  %s671, 64, %s668, %s654
        $region68: #{tpu_custom_call.1} parent=51 // pred_fallthru
          _
        // Predicated region
        $region69: #{tpu_custom_call.1} parent=51 // pred_check
          %p674 = pneg %p250
        $region70: #{tpu_custom_call.1} parent=51 // pred_check_branch
          %676 = sbr.rel (%p674) target = $region72
        $region71: #{tpu_custom_call.1} parent=51 // pred_region
          _
        $region72: #{tpu_custom_call.1} parent=51 // pred_fallthru
          _
      $region52: #{tpu_custom_call.1} parent=5 // pred_fallthru
        _
      %p677 = scmp.le.s32.totalorder 2, %s23
      // Predicated region
      $region73: #{tpu_custom_call.1} parent=5 // pred_check
        %p678 = pneg %p677
      $region74: #{tpu_custom_call.1} parent=5 // pred_check_branch
        %680 = sbr.rel (%p678) target = $region76
      $region75: #{tpu_custom_call.1} parent=5 // pred_region
        %s681 = ssub.s32 %s23, 2
        // Predicated region
        $region77: #{tpu_custom_call.1} parent=75 // pred_check
          %p682 = pneg %p230
        $region78: #{tpu_custom_call.1} parent=75 // pred_check_branch
          %684 = sbr.rel (%p682) target = $region80
        $region79: #{tpu_custom_call.1} parent=75 // pred_region
          %s685 = sand.u32 %s215, 1
          %s686 = scalar_lea.sflag [#allocation4], %s685
          %s687 = sand.u32 %s215, 1
          %s688 = smul.addr %s687, 4
          %s689 = scalar_lea.vmem [#allocation8], %s688
          %690 = dma.done %s686, 64
        $region80: #{tpu_custom_call.1} parent=75 // pred_fallthru
          _
        // Predicated region
        $region81: #{tpu_custom_call.1} parent=75 // pred_check
          %p691 = pneg %p256
        $region82: #{tpu_custom_call.1} parent=75 // pred_check_branch
          %693 = sbr.rel (%p691) target = $region84
        $region83: #{tpu_custom_call.1} parent=75 // pred_region
          %p694 = scmp.lt.s32.totalorder %s29, 1
          %s695 = scalar_select %p694, %s29, 1
          %s696 = scalar_lea.vmem %s9, %s695
        $region84: #{tpu_custom_call.1} parent=75 // pred_fallthru
          _
      $region76: #{tpu_custom_call.1} parent=5 // pred_fallthru
        _
    $region6: #{tpu_custom_call.1} parent=1 // loop_footer
      %s27 = sadd.s32 1, %s23
    $region7: #{tpu_custom_call.1} parent=1 // loop_footer_branch
      %22 = sbr.rel target = $region3
    $region8: #{tpu_custom_call.1} parent=1 // loop_exit
      _
    %697 = vsyncpa [#allocation3], 1
    %s698 = scalar_lea.sflag [#allocation3], 1
    %699 = vsyncpa %s698, 1
    %700 = vsyncpa [#allocation6], 1
    %701 = vsyncpa [#allocation4], 1
    %s702 = scalar_lea.sflag [#allocation4], 1
    %703 = vsyncpa %s702, 1

// kernel: tpu_custom_call.1
$region0: #{tpu_custom_call.1}
  #allocation0 [shape = 'u32[]', space=smem, size = 0x4, offset = 0x4, fixed_abs, tag = 'smem constant byte address 0x4 - core index']
  #allocation1 [shape = 'u32[144,128]{1,0:T(1,128)}', space=vmem, size = 0x12000, scoped, tag = 'internal scratch']
  %s0 = inlined_call_operand.hbm [shape: bf16[12,32], index: 0, kind: input, shape index: {}]
  %s1 = inlined_call_operand.vmem [shape: s32[12,1], index: 1, kind: input, shape index: {}]
  %s2 = inlined_call_operand.vmem [shape: bf16[32,32], index: 2, kind: input, shape index: {}]
  %s3 = inlined_call_operand.hbm [shape: f32[1,32], index: 3, kind: input, shape index: {}]
  %s4 = inlined_call_operand.vmem [shape: bf16[32,32], index: 4, kind: input, shape index: {}]
  %s5 = inlined_call_operand.vmem [shape: f32[1,32], index: 5, kind: input, shape index: {}]
  %s6 = inlined_call_operand.hbm [shape: bf16[32,128], index: 6, kind: input, shape index: {}]
  %s7 = inlined_call_operand.vmem [shape: f32[1,128], index: 7, kind: input, shape index: {}]
  %s8 = inlined_call_operand.hbm [shape: bf16[12,128], index: 8, kind: output, shape index: {0}]
  %s9 = inlined_call_operand.vmem [shape: f32[2,1,1], index: 9, kind: output, shape index: {1}]
  %10 = xla_tuple %s8, %s9
  %s11 = sld [smem:[#allocation0]]
  $region85: #{tpu_custom_call.1} parent=0
    _
  %s13 = ssub.s32 1, %s11
  %s14 = scalar_select 0, %s13, %s11
  $region1: #{tpu_custom_call.1} parent=0
    #allocation2 [shape = 'u8[4096]{0}', space=vmem, size = 0x1000, scoped, tag = 'input window, operand 0']
    #allocation3 [shape = 's32[2]{0}', space=sflag, size = 0x8, scoped, tag = 'scoped memory for tpu_custom_call.1']
    #allocation4 [shape = 's32[2]{0}', space=sflag, size = 0x8, scoped, tag = 'scoped memory for tpu_custom_call.1']
    #allocation5 [shape = 'u8[512]{0}', space=vmem, size = 0x400, scoped, tag = 'input window, operand 3, single buffered']
    #allocation6 [shape = 's32[1]{0}', space=sflag, size = 0x4, scoped, tag = 'scoped memory for tpu_custom_call.1']
    #allocation7 [shape = 'u8[8192]{0}', space=vmem, size = 0x2000, scoped, tag = 'input window, operand 6, single buffered']
    #allocation8 [shape = 'u8[4096]{0}', space=vmem, size = 0x1000, scoped, tag = 'output window, operand 0']
    %15 = vsyncpa [#allocation3], 0
    %s16 = scalar_lea.sflag [#allocation3], 1
    %17 = vsyncpa %s16, 0
    %18 = vsyncpa [#allocation6], 0
    %19 = vsyncpa [#allocation4], 0
    %s20 = scalar_lea.sflag [#allocation4], 1
    %21 = vsyncpa %s20, 0
    loop: start=0, step=1, limit=4
    $region2: #{tpu_custom_call.1} parent=1 // loop_pre_header
      _
    $region3: #{tpu_custom_call.1} parent=1 // loop_header
      %s23 = sphi 0, %s27
      %p24 = scmp.ge.s32.totalorder %s23, 4
      %s33 = sphi 0, %s35
      %s36 = sphi 0, %s33
      %s37 = sphi 0, %s36
      %s53 = sphi 0, %s37
      %s59 = sphi 0, %s61
      %s62 = sphi 0, %s59
      %s63 = sphi 0, %s62
      %s79 = sphi 0, %s63
      %s83 = sphi 0, %s83
      %s85 = sphi 0, %s83
      %s86 = sphi 0, %s85
      %s100 = sphi 0, %s86
      %s104 = sphi 0, %s104
      %s106 = sphi 0, %s104
      %s107 = sphi 0, %s106
      %s121 = sphi 0, %s107
      %s125 = sphi 0, %s125
      %s127 = sphi 0, %s125
      %s128 = sphi 0, %s127
      %s142 = sphi 0, %s128
      %s146 = sphi 0, %s146
      %s148 = sphi 0, %s146
      %s149 = sphi 0, %s148
      %s163 = sphi 0, %s149
      %s167 = sphi 0, %s167
      %s169 = sphi 0, %s167
      %s170 = sphi 0, %s169
      %s184 = sphi 0, %s170
      %s188 = sphi 0, %s188
      %s190 = sphi 0, %s188
      %s191 = sphi 0, %s190
      %s205 = sphi 0, %s191
      %s211 = sphi 0, %s213
      %s214 = sphi 0, %s211
      %s215 = sphi 0, %s214
      %s231 = sphi 0, %s215
      %s237 = sphi 0, %s239
      %s240 = sphi 0, %s237
      %s241 = sphi 0, %s240
      %s257 = sphi 0, %s241
    $region4: #{tpu_custom_call.1} parent=1 // loop_header_branch
      %26 = sbr.rel (%p24) target = $region8
    $region5: #{tpu_custom_call.1} parent=1 // loop_body
      %s28 = ssub.s32 %s23, 1
      %s29 = ssub.s32 %s23, 2
      %s30 = sadd.s32 %s23, 1
      %s31 = ssub.s32 %s23, %s30
      %p32 = scmp.eq.s32.totalorder %s31, 0
      %s34 = sadd.s32 %s33, 1
      %s35 = scalar_select %p32, %s33, %s34
      %p38 = pneg %p32
      %p39 = scmp.eq.s32.totalorder %s23, 1
      %p40 = por %p38, %p39
      %p41 = scmp.ne.s32.totalorder %s33, %s36
      %p42 = scmp.eq.s32.totalorder %s23, 0
      %p43 = por %p41, %p42
      %p44 = scmp.ne.s32.totalorder %s33, %s36
      %p45 = scmp.eq.s32.totalorder %s28, 1
      %p46 = por %p44, %p45
      %p47 = scmp.ne.s32.totalorder %s36, %s37
      %p48 = scmp.eq.s32.totalorder %s28, 0
      %p49 = por %p47, %p48
      %p50 = scmp.ne.s32.totalorder %s36, %s37
      %p51 = scmp.eq.s32.totalorder %s29, 1
      %p52 = por %p50, %p51
      %p54 = scmp.ne.s32.totalorder %s37, %s53
      %p55 = scmp.eq.s32.totalorder %s29, 0
      %p56 = por %p54, %p55
      %s57 = ssub.s32 %s23, %s30
      %p58 = scmp.eq.s32.totalorder %s57, 0
      %s60 = sadd.s32 %s59, 1
      %s61 = scalar_select %p58, %s59, %s60
      %p64 = pneg %p58
      %p65 = scmp.eq.s32.totalorder %s23, 1
      %p66 = por %p64, %p65
      %p67 = scmp.ne.s32.totalorder %s59, %s62
      %p68 = scmp.eq.s32.totalorder %s23, 0
      %p69 = por %p67, %p68
      %p70 = scmp.ne.s32.totalorder %s59, %s62
      %p71 = scmp.eq.s32.totalorder %s28, 1
      %p72 = por %p70, %p71
      %p73 = scmp.ne.s32.totalorder %s62, %s63
      %p74 = scmp.eq.s32.totalorder %s28, 0
      %p75 = por %p73, %p74
      %p76 = scmp.ne.s32.totalorder %s62, %s63
      %p77 = scmp.eq.s32.totalorder %s29, 1
      %p78 = por %p76, %p77
      %p80 = scmp.ne.s32.totalorder %s63, %s79
      %p81 = scmp.eq.s32.totalorder %s29, 0
      %p82 = por %p80, %p81
      %s84 = sadd.s32 %s83, 1
      %p87 = scmp.eq.s32.totalorder %s23, 1
      %p88 = scmp.ne.s32.totalorder %s83, %s85
      %p89 = scmp.eq.s32.totalorder %s23, 0
      %p90 = por %p88, %p89
      %p91 = scmp.ne.s32.totalorder %s83, %s85
      %p92 = scmp.eq.s32.totalorder %s28, 1
      %p93 = por %p91, %p92
      %p94 = scmp.ne.s32.totalorder %s85, %s86
      %p95 = scmp.eq.s32.totalorder %s28, 0
      %p96 = por %p94, %p95
      %p97 = scmp.ne.s32.totalorder %s85, %s86
      %p98 = scmp.eq.s32.totalorder %s29, 1
      %p99 = por %p97, %p98
      %p101 = scmp.ne.s32.totalorder %s86, %s100
      %p102 = scmp.eq.s32.totalorder %s29, 0
      %p103 = por %p101, %p102
      %s105 = sadd.s32 %s104, 1
      %p108 = scmp.eq.s32.totalorder %s23, 1
      %p109 = scmp.ne.s32.totalorder %s104, %s106
      %p110 = scmp.eq.s32.totalorder %s23, 0
      %p111 = por %p109, %p110
      %p112 = scmp.ne.s32.totalorder %s104, %s106
      %p113 = scmp.eq.s32.totalorder %s28, 1
      %p114 = por %p112, %p113
      %p115 = scmp.ne.s32.totalorder %s106, %s107
      %p116 = scmp.eq.s32.totalorder %s28, 0
      %p117 = por %p115, %p116
      %p118 = scmp.ne.s32.totalorder %s106, %s107
      %p119 = scmp.eq.s32.totalorder %s29, 1
      %p120 = por %p118, %p119
      %p122 = scmp.ne.s32.totalorder %s107, %s121
      %p123 = scmp.eq.s32.totalorder %s29, 0
      %p124 = por %p122, %p123
      %s126 = sadd.s32 %s125, 1
      %p129 = scmp.eq.s32.totalorder %s23, 1
      %p130 = scmp.ne.s32.totalorder %s125, %s127
      %p131 = scmp.eq.s32.totalorder %s23, 0
      %p132 = por %p130, %p131
      %p133 = scmp.ne.s32.totalorder %s125, %s127
      %p134 = scmp.eq.s32.totalorder %s28, 1
      %p135 = por %p133, %p134
      %p136 = scmp.ne.s32.totalorder %s127, %s128
      %p137 = scmp.eq.s32.totalorder %s28, 0
      %p138 = por %p136, %p137
      %p139 = scmp.ne.s32.totalorder %s127, %s128
      %p140 = scmp.eq.s32.totalorder %s29, 1
      %p141 = por %p139, %p140
      %p143 = scmp.ne.s32.totalorder %s128, %s142
      %p144 = scmp.eq.s32.totalorder %s29, 0
      %p145 = por %p143, %p144
      %s147 = sadd.s32 %s146, 1
      %p150 = scmp.eq.s32.totalorder %s23, 1
      %p151 = scmp.ne.s32.totalorder %s146, %s148
      %p152 = scmp.eq.s32.totalorder %s23, 0
      %p153 = por %p151, %p152
      %p154 = scmp.ne.s32.totalorder %s146, %s148
      %p155 = scmp.eq.s32.totalorder %s28, 1
      %p156 = por %p154, %p155
      %p157 = scmp.ne.s32.totalorder %s148, %s149
      %p158 = scmp.eq.s32.totalorder %s28, 0
      %p159 = por %p157, %p158
      %p160 = scmp.ne.s32.totalorder %s148, %s149
      %p161 = scmp.eq.s32.totalorder %s29, 1
      %p162 = por %p160, %p161
      %p164 = scmp.ne.s32.totalorder %s149, %s163
      %p165 = scmp.eq.s32.totalorder %s29, 0
      %p166 = por %p164, %p165
      %s168 = sadd.s32 %s167, 1
      %p171 = scmp.eq.s32.totalorder %s23, 1
      %p172 = scmp.ne.s32.totalorder %s167, %s169
      %p173 = scmp.eq.s32.totalorder %s23, 0
      %p174 = por %p172, %p173
      %p175 = scmp.ne.s32.totalorder %s167, %s169
      %p176 = scmp.eq.s32.totalorder %s28, 1
      %p177 = por %p175, %p176
      %p178 = scmp.ne.s32.totalorder %s169, %s170
      %p179 = scmp.eq.s32.totalorder %s28, 0
      %p180 = por %p178, %p179
      %p181 = scmp.ne.s32.totalorder %s169, %s170
      %p182 = scmp.eq.s32.totalorder %s29, 1
      %p183 = por %p181, %p182
      %p185 = scmp.ne.s32.totalorder %s170, %s184
      %p186 = scmp.eq.s32.totalorder %s29, 0
      %p187 = por %p185, %p186
      %s189 = sadd.s32 %s188, 1
      %p192 = scmp.eq.s32.totalorder %s23, 1
      %p193 = scmp.ne.s32.totalorder %s188, %s190
      %p194 = scmp.eq.s32.totalorder %s23, 0
      %p195 = por %p193, %p194
      %p196 = scmp.ne.s32.totalorder %s188, %s190
      %p197 = scmp.eq.s32.totalorder %s28, 1
      %p198 = por %p196, %p197
      %p199 = scmp.ne.s32.totalorder %s190, %s191
      %p200 = scmp.eq.s32.totalorder %s28, 0
      %p201 = por %p199, %p200
      %p202 = scmp.ne.s32.totalorder %s190, %s191
      %p203 = scmp.eq.s32.totalorder %s29, 1
      %p204 = por %p202, %p203
      %p206 = scmp.ne.s32.totalorder %s191, %s205
      %p207 = scmp.eq.s32.totalorder %s29, 0
      %p208 = por %p206, %p207
      %s209 = ssub.s32 %s23, %s30
      %p210 = scmp.eq.s32.totalorder %s209, 0
      %s212 = sadd.s32 %s211, 1
      %s213 = scalar_select %p210, %s211, %s212
      %p216 = pneg %p210
      %p217 = scmp.eq.s32.totalorder %s23, 1
      %p218 = por %p216, %p217
      %p219 = scmp.ne.s32.totalorder %s211, %s214
      %p220 = scmp.eq.s32.totalorder %s23, 0
      %p221 = por %p219, %p220
      %p222 = scmp.ne.s32.totalorder %s211, %s214
      %p223 = scmp.eq.s32.totalorder %s28, 1
      %p224 = por %p222, %p223
      %p225 = scmp.ne.s32.totalorder %s214, %s215
      %p226 = scmp.eq.s32.totalorder %s28, 0
      %p227 = por %p225, %p226
      %p228 = scmp.ne.s32.totalorder %s214, %s215
      %p229 = scmp.eq.s32.totalorder %s29, 1
      %p230 = por %p228, %p229
      %p232 = scmp.ne.s32.totalorder %s215, %s231
      %p233 = scmp.eq.s32.totalorder %s29, 0
      %p234 = por %p232, %p233
      %s235 = ssub.s32 %s23, %s30
      %p236 = scmp.eq.s32.totalorder %s235, 0
      %s238 = sadd.s32 %s237, 1
      %s239 = scalar_select %p236, %s237, %s238
      %p242 = pneg %p236
      %p243 = scmp.eq.s32.totalorder %s23, 1
      %p244 = por %p242, %p243
      %p245 = scmp.ne.s32.totalorder %s237, %s240
      %p246 = scmp.eq.s32.totalorder %s23, 0
      %p247 = por %p245, %p246
      %p248 = scmp.ne.s32.totalorder %s237, %s240
      %p249 = scmp.eq.s32.totalorder %s28, 1
      %p250 = por %p248, %p249
      %p251 = scmp.ne.s32.totalorder %s240, %s241
      %p252 = scmp.eq.s32.totalorder %s28, 0
      %p253 = por %p251, %p252
      %p254 = scmp.ne.s32.totalorder %s240, %s241
      %p255 = scmp.eq.s32.totalorder %s29, 1
      %p256 = por %p254, %p255
      %p258 = scmp.ne.s32.totalorder %s241, %s257
      %p259 = scmp.eq.s32.totalorder %s29, 0
      %p260 = por %p258, %p259
      %p261 = scmp.le.s32.totalorder 1, %s23
      %p262 = scmp.lt.s32.totalorder %s23, 3
      %p263 = pnand %p261, %p262
      %p264 = pneg %p263
      // Predicated region
      $region9: #{tpu_custom_call.1} parent=5 // pred_check
        _
      $region10: #{tpu_custom_call.1} parent=5 // pred_check_branch
        %266 = sbr.rel (%p263) target = $region12
      $region11: #{tpu_custom_call.1} parent=5 // pred_region
        %s267 = ssub.s32 %s23, 1
        // Predicated region
        $region13: #{tpu_custom_call.1} parent=11 // pred_check
          %p268 = pneg %p96
        $region14: #{tpu_custom_call.1} parent=11 // pred_check_branch
          %270 = sbr.rel (%p268) target = $region16
        $region15: #{tpu_custom_call.1} parent=11 // pred_region
          _
        $region16: #{tpu_custom_call.1} parent=11 // pred_fallthru
          _
        // Predicated region
        $region17: #{tpu_custom_call.1} parent=11 // pred_check
          %p271 = pneg %p117
        $region18: #{tpu_custom_call.1} parent=11 // pred_check_branch
          %273 = sbr.rel (%p271) target = $region20
        $region19: #{tpu_custom_call.1} parent=11 // pred_region
          %s275 = ssub.s32 16, 16
          %276 = vsyncadd [#allocation6], %s275
          %s278 = sshll.u32 [#allocation5], 4
          %s279 = int_to_ptr.vmem [resolvable:$true] %s278
          %281 = dma.hbm_to_vmem [thread:$0]  %s3, 16, %s279, [#allocation6]
        $region20: #{tpu_custom_call.1} parent=11 // pred_fallthru
          _
        // Predicated region
        $region21: #{tpu_custom_call.1} parent=11 // pred_check
          %p282 = pneg %p138
        $region22: #{tpu_custom_call.1} parent=11 // pred_check_branch
          %284 = sbr.rel (%p282) target = $region24
        $region23: #{tpu_custom_call.1} parent=11 // pred_region
          _
        $region24: #{tpu_custom_call.1} parent=11 // pred_fallthru
          _
        // Predicated region
        $region25: #{tpu_custom_call.1} parent=11 // pred_check
          %p285 = pneg %p159
        $region26: #{tpu_custom_call.1} parent=11 // pred_check_branch
          %287 = sbr.rel (%p285) target = $region28
        $region27: #{tpu_custom_call.1} parent=11 // pred_region
          _
        $region28: #{tpu_custom_call.1} parent=11 // pred_fallthru
          _
        // Predicated region
        $region29: #{tpu_custom_call.1} parent=11 // pred_check
          %p288 = pneg %p180
        $region30: #{tpu_custom_call.1} parent=11 // pred_check_branch
          %290 = sbr.rel (%p288) target = $region32
        $region31: #{tpu_custom_call.1} parent=11 // pred_region
          %s292 = ssub.s32 256, 256
          %293 = vsyncadd [#allocation6], %s292
          %s294 = sshll.u32 [#allocation7], 4
          %s295 = int_to_ptr.vmem [resolvable:$true] %s294
          %300 = dma.hbm_to_vmem [thread:$0]  %s6, 256, %s295, [#allocation6], 64, 64, 4
        $region32: #{tpu_custom_call.1} parent=11 // pred_fallthru
          _
        // Predicated region
        $region33: #{tpu_custom_call.1} parent=11 // pred_check
          %p301 = pneg %p201
        $region34: #{tpu_custom_call.1} parent=11 // pred_check_branch
          %303 = sbr.rel (%p301) target = $region36
        $region35: #{tpu_custom_call.1} parent=11 // pred_region
          _
        $region36: #{tpu_custom_call.1} parent=11 // pred_fallthru
          _
      $region12: #{tpu_custom_call.1} parent=5 // pred_fallthru
        _
      %p304 = scmp.lt.s32.totalorder %s23, 2
      // Predicated region
      $region37: #{tpu_custom_call.1} parent=5 // pred_check
        %p305 = pneg %p304
      $region38: #{tpu_custom_call.1} parent=5 // pred_check_branch
        %307 = sbr.rel (%p305) target = $region40
      $region39: #{tpu_custom_call.1} parent=5 // pred_region
        // Predicated region
        $region41: #{tpu_custom_call.1} parent=39 // pred_check
          %p308 = pneg %p43
        $region42: #{tpu_custom_call.1} parent=39 // pred_check_branch
          %310 = sbr.rel (%p308) target = $region44
        $region43: #{tpu_custom_call.1} parent=39 // pred_region
          %s311 = sand.u32 %s33, 1
          %s312 = scalar_lea.sflag [#allocation3], %s311
          %s313 = sand.u32 %s33, 1
          %s314 = smul.addr %s313, 4
          %s315 = scalar_lea.vmem [#allocation2], %s314
          %s317 = ssub.s32 64, 64
          %318 = vsyncadd %s312, %s317
          %s319 = smul.addr %s23, 64
          %s320 = scalar_lea.hbm %s0, %s319
          %s322 = sshll.u32 %s315, 4
          %s323 = int_to_ptr.vmem [resolvable:$true] %s322
          %325 = dma.hbm_to_vmem [thread:$0]  %s320, 64, %s323, %s312
        $region44: #{tpu_custom_call.1} parent=39 // pred_fallthru
          _
        // Predicated region
        $region45: #{tpu_custom_call.1} parent=39 // pred_check
          %p326 = pneg %p69
        $region46: #{tpu_custom_call.1} parent=39 // pred_check_branch
          %328 = sbr.rel (%p326) target = $region48
        $region47: #{tpu_custom_call.1} parent=39 // pred_region
          %p329 = scmp.lt.s32.totalorder %s23, 1
          %s330 = scalar_select %p329, %s23, 1
          %s331 = smul.addr %s330, 8
          %s332 = scalar_lea.vmem %s1, %s331
        $region48: #{tpu_custom_call.1} parent=39 // pred_fallthru
          _
      $region40: #{tpu_custom_call.1} parent=5 // pred_fallthru
        _
      %p333 = scmp.le.s32.totalorder 1, %s23
      %p334 = scmp.lt.s32.totalorder %s23, 3
      %p335 = pnand %p333, %p334
      %p336 = pneg %p335
      // Predicated region
      $region49: #{tpu_custom_call.1} parent=5 // pred_check
        _
      $region50: #{tpu_custom_call.1} parent=5 // pred_check_branch
        %338 = sbr.rel (%p335) target = $region52
      $region51: #{tpu_custom_call.1} parent=5 // pred_region
        %s339 = ssub.s32 %s23, 1
        %s340 = sand.u32 %s36, 1
        %s341 = scalar_lea.sflag [#allocation3], %s340
        %s342 = sand.u32 %s36, 1
        %s343 = smul.addr %s342, 4
        %s344 = scalar_lea.vmem [#allocation2], %s343
        // Predicated region
        $region53: #{tpu_custom_call.1} parent=51 // pred_check
          %p345 = pneg %p49
        $region54: #{tpu_custom_call.1} parent=51 // pred_check_branch
          %347 = sbr.rel (%p345) target = $region56
        $region55: #{tpu_custom_call.1} parent=51 // pred_region
          %348 = dma.done %s341, 64
        $region56: #{tpu_custom_call.1} parent=51 // pred_fallthru
          _
        // Predicated region
        $region57: #{tpu_custom_call.1} parent=51 // pred_check
          %p349 = pneg %p117
        $region58: #{tpu_custom_call.1} parent=51 // pred_check_branch
          %351 = sbr.rel (%p349) target = $region60
        $region59: #{tpu_custom_call.1} parent=51 // pred_region
          %352 = dma.done [#allocation6], 16
        $region60: #{tpu_custom_call.1} parent=51 // pred_fallthru
          _
        // Predicated region
        $region61: #{tpu_custom_call.1} parent=51 // pred_check
          %p353 = pneg %p180
        $region62: #{tpu_custom_call.1} parent=51 // pred_check_branch
          %355 = sbr.rel (%p353) target = $region64
        $region63: #{tpu_custom_call.1} parent=51 // pred_region
          %356 = dma.done [#allocation6], 256
        $region64: #{tpu_custom_call.1} parent=51 // pred_fallthru
          _
        %s357 = sand.u32 %s36, 1
        %s358 = scalar_lea.sflag [#allocation3], %s357
        %s359 = sand.u32 %s36, 1
        %s360 = smul.addr %s359, 4
        %s361 = scalar_lea.vmem [#allocation2], %s360
        %p362 = pneg %p49
        %p363 = pneg %p46
        %p364 = scmp.lt.s32.totalorder %s28, 1
        %s365 = scalar_select %p364, %s28, 1
        %s366 = smul.addr %s365, 8
        %s367 = scalar_lea.vmem %s1, %s366
        %p368 = pneg %p75
        %p369 = pneg %p72
        %p370 = pneg %p96
        %p371 = pneg %p93
        %p372 = pneg %p117
        %p373 = pneg %p114
        %p374 = pneg %p138
        %p375 = pneg %p135
        %p376 = pneg %p159
        %p377 = pneg %p156
        %p378 = pneg %p180
        %p379 = pneg %p177
        %p380 = pneg %p201
        %p381 = pneg %p198
        %p382 = pneg %p227
        %p383 = pneg %p224
        %s384 = sand.u32 %s214, 1
        %s385 = scalar_lea.sflag [#allocation4], %s384
        %s386 = sand.u32 %s214, 1
        %s387 = smul.addr %s386, 4
        %s388 = scalar_lea.vmem [#allocation8], %s387
        %p389 = pneg %p253
        %p390 = pneg %p250
        %p391 = scmp.lt.s32.totalorder %s28, 1
        %s392 = scalar_select %p391, %s28, 1
        %s393 = scalar_lea.vmem %s9, %s392
        %p394 = scmp.lt.s32.totalorder %s28, 1
        %s395 = scalar_select %p394, %s28, 1
        %s396 = smul.addr %s395, 8
        %s397 = scalar_lea.vmem %s1, %s396
        %p398 = scmp.lt.s32.totalorder %s28, 1
        %s399 = scalar_select %p398, %s28, 1
        %s400 = scalar_lea.vmem %s9, %s399
        %v402 = vld [vmem:[%s344] sm:$0xf]
        %v403 = vld [vmem:[%s2] sm:$0xf]
        %v404 = vld [vmem:[%s2 + $0x4] sm:$0xf]
        %v405 = vld [vmem:[%s2 + $0x8] sm:$0xf]
        %v406 = vld [vmem:[%s2 + $0xc] sm:$0xf]
        %v407 = vld [vmem:[#allocation5] sm:$0x1]
        %v409 = vlaneseq
        %v410 = vshrl.u32 %v409, 7
        %v411 = vsub.s32 0, %v410
        %v412 = vrot.slane %v407, %v411
        %v418 = vunpack.c.l.b16 %v403
        %v419 = vunpack.c.l.b16 %v404
        %v420 = vunpack.c.l.b16 %v405
        %v421 = vunpack.c.l.b16 %v406
        %v422 = vpack.c.b16 %v419, %v418
        %v423 = vpack.c.b16 %v421, %v420
        %vm426 = vcmask 261120
        %v428 = vsel %vm426, %v402, 0
        %430 = vmatprep.subr.bf16.mxu0 0
        %431 = vmatpush1.bf16.msra.mxu0 %v422
        %432 = vmatprep.subr.bf16.mxu0 0
        %433 = vmatpush1.bf16.msra.mxu0 %v423
        %434 = vmatprep.subr.bf16.mxu0 0
        %435 = vmatpush1.bf16.msra.mxu0 0
        %436 = vmatprep.subr.bf16.mxu0 0
        %437 = vmatpush1.bf16.msra.mxu0 0
        %438 = vmatprep.subr.bf16.mxu0 0
        %439 = vmatpush1.bf16.msra.mxu0 0
        %440 = vmatprep.subr.bf16.mxu0 0
        %441 = vmatpush1.bf16.msra.mxu0 0
        %442 = vmatprep.subr.bf16.mxu0 0
        %443 = vmatpush1.bf16.msra.mxu0 0
        %444 = vmatprep.subr.bf16.mxu0 0
        %445 = vmatpush1.bf16.msra.mxu0 0
        %446 = vmatprep.subr.bf16.mxu0 0
        %447 = vmatpush1.bf16.msra.mxu0 0
        %448 = vmatprep.subr.bf16.mxu0 0
        %449 = vmatpush1.bf16.msra.mxu0 0
        %450 = vmatprep.subr.bf16.mxu0 0
        %451 = vmatpush1.bf16.msra.mxu0 0
        %452 = vmatprep.subr.bf16.mxu0 0
        %453 = vmatpush1.bf16.msra.mxu0 0
        %454 = vmatprep.subr.bf16.mxu0 0
        %455 = vmatpush1.bf16.msra.mxu0 0
        %456 = vmatprep.subr.bf16.mxu0 0
        %457 = vmatpush1.bf16.msra.mxu0 0
        %458 = vmatprep.subr.bf16.mxu0 0
        %459 = vmatpush1.bf16.msra.mxu0 0
        %460 = vmatprep.subr.bf16.mxu0 0
        %461 = vmatpush1.bf16.msra.mxu0 0
        %462 = vmatprep.mubr.bf16.mxu0 0
        %463 = vmatmul.mubr.bf16.gmra.mrb[0].mxu0 %v428
        %v464 = vpop.f32.mrb[0].mxu0
        %v465 = vadd.f32 %v412, %v464
        %v466 = vpop.f32.mrb[0].mxu0
        %v467 = vpop.f32.mrb[0].mxu0
        %v468 = vpop.f32.mrb[0].mxu0
        %469 = vdwg.mxu0
        %v470 = vmax.f32 %v465, 0.0
        %v471 = vpack.c.bf16 %v470, %v470
        %v472 = vld [vmem:[%s4] sm:$0xf]
        %v473 = vld [vmem:[%s4 + $0x4] sm:$0xf]
        %v474 = vld [vmem:[%s4 + $0x8] sm:$0xf]
        %v475 = vld [vmem:[%s4 + $0xc] sm:$0xf]
        %v476 = vld [vmem:[%s5] sm:$0x1]
        %v478 = vlaneseq
        %v479 = vshrl.u32 %v478, 7
        %v480 = vsub.s32 0, %v479
        %v481 = vrot.slane %v476, %v480
        %v487 = vunpack.c.l.b16 %v472
        %v488 = vunpack.c.l.b16 %v473
        %v489 = vunpack.c.l.b16 %v474
        %v490 = vunpack.c.l.b16 %v475
        %v491 = vpack.c.b16 %v488, %v487
        %v492 = vpack.c.b16 %v490, %v489
        %v496 = vsel %vm426, %v471, 0
        %498 = vmatprep.subr.bf16.mxu0 0
        %499 = vmatpush1.bf16.msra.mxu0 %v491
        %500 = vmatprep.subr.bf16.mxu0 0
        %501 = vmatpush1.bf16.msra.mxu0 %v492
        %502 = vmatprep.subr.bf16.mxu0 0
        %503 = vmatpush1.bf16.msra.mxu0 0
        %504 = vmatprep.subr.bf16.mxu0 0
        %505 = vmatpush1.bf16.msra.mxu0 0
        %506 = vmatprep.subr.bf16.mxu0 0
        %507 = vmatpush1.bf16.msra.mxu0 0
        %508 = vmatprep.subr.bf16.mxu0 0
        %509 = vmatpush1.bf16.msra.mxu0 0
        %510 = vmatprep.subr.bf16.mxu0 0
        %511 = vmatpush1.bf16.msra.mxu0 0
        %512 = vmatprep.subr.bf16.mxu0 0
        %513 = vmatpush1.bf16.msra.mxu0 0
        %514 = vmatprep.subr.bf16.mxu0 0
        %515 = vmatpush1.bf16.msra.mxu0 0
        %516 = vmatprep.subr.bf16.mxu0 0
        %517 = vmatpush1.bf16.msra.mxu0 0
        %518 = vmatprep.subr.bf16.mxu0 0
        %519 = vmatpush1.bf16.msra.mxu0 0
        %520 = vmatprep.subr.bf16.mxu0 0
        %521 = vmatpush1.bf16.msra.mxu0 0
        %522 = vmatprep.subr.bf16.mxu0 0
        %523 = vmatpush1.bf16.msra.mxu0 0
        %524 = vmatprep.subr.bf16.mxu0 0
        %525 = vmatpush1.bf16.msra.mxu0 0
        %526 = vmatprep.subr.bf16.mxu0 0
        %527 = vmatpush1.bf16.msra.mxu0 0
        %528 = vmatprep.subr.bf16.mxu0 0
        %529 = vmatpush1.bf16.msra.mxu0 0
        %530 = vmatprep.mubr.bf16.mxu0 0
        %531 = vmatmul.mubr.bf16.gmra.mrb[0].mxu0 %v496
        %v532 = vpop.f32.mrb[0].mxu0
        %v533 = vadd.f32 %v481, %v532
        %v534 = vpop.f32.mrb[0].mxu0
        %v535 = vpop.f32.mrb[0].mxu0
        %v536 = vpop.f32.mrb[0].mxu0
        %537 = vdwg.mxu0
        %v538 = vmax.f32 %v533, 0.0
        %v539 = vpack.c.bf16 %v538, %v538
        %v540 = vld [vmem:[#allocation7] sm:$0xf]
        %v541 = vld [vmem:[#allocation7 + $0x4] sm:$0xf]
        %v542 = vld [vmem:[#allocation7 + $0x8] sm:$0xf]
        %v543 = vld [vmem:[#allocation7 + $0xc] sm:$0xf]
        %v544 = vld [vmem:[%s7] sm:$0x1]
        %v546 = vlaneseq
        %v547 = vshrl.u32 %v546, 7
        %v548 = vsub.s32 0, %v547
        %v549 = vrot.slane %v544, %v548
        %v555 = vunpack.c.l.b16 %v540
        %v556 = vunpack.c.l.b16 %v541
        %v557 = vunpack.c.l.b16 %v542
        %v558 = vunpack.c.l.b16 %v543
        %v559 = vpack.c.b16 %v556, %v555
        %v560 = vpack.c.b16 %v558, %v557
        %v564 = vsel %vm426, %v539, 0
        %566 = vmatprep.subr.bf16.mxu0 0
        %567 = vmatpush1.bf16.msra.mxu0 %v559
        %568 = vmatprep.subr.bf16.mxu0 0
        %569 = vmatpush1.bf16.msra.mxu0 %v560
        %570 = vmatprep.subr.bf16.mxu0 0
        %571 = vmatpush1.bf16.msra.mxu0 0
        %572 = vmatprep.subr.bf16.mxu0 0
        %573 = vmatpush1.bf16.msra.mxu0 0
        %574 = vmatprep.subr.bf16.mxu0 0
        %575 = vmatpush1.bf16.msra.mxu0 0
        %576 = vmatprep.subr.bf16.mxu0 0
        %577 = vmatpush1.bf16.msra.mxu0 0
        %578 = vmatprep.subr.bf16.mxu0 0
        %579 = vmatpush1.bf16.msra.mxu0 0
        %580 = vmatprep.subr.bf16.mxu0 0
        %581 = vmatpush1.bf16.msra.mxu0 0
        %582 = vmatprep.subr.bf16.mxu0 0
        %583 = vmatpush1.bf16.msra.mxu0 0
        %584 = vmatprep.subr.bf16.mxu0 0
        %585 = vmatpush1.bf16.msra.mxu0 0
        %586 = vmatprep.subr.bf16.mxu0 0
        %587 = vmatpush1.bf16.msra.mxu0 0
        %588 = vmatprep.subr.bf16.mxu0 0
        %589 = vmatpush1.bf16.msra.mxu0 0
        %590 = vmatprep.subr.bf16.mxu0 0
        %591 = vmatpush1.bf16.msra.mxu0 0
        %592 = vmatprep.subr.bf16.mxu0 0
        %593 = vmatpush1.bf16.msra.mxu0 0
        %594 = vmatprep.subr.bf16.mxu0 0
        %595 = vmatpush1.bf16.msra.mxu0 0
        %596 = vmatprep.subr.bf16.mxu0 0
        %597 = vmatpush1.bf16.msra.mxu0 0
        %598 = vmatprep.mubr.bf16.mxu0 0
        %599 = vmatmul.mubr.bf16.gmra.mrb[0].mxu0 %v564
        %v600 = vpop.f32.mrb[0].mxu0
        %v601 = vadd.f32 %v549, %v600
        %v602 = vpop.f32.mrb[0].mxu0
        %v603 = vpop.f32.mrb[0].mxu0
        %v604 = vpop.f32.mrb[0].mxu0
        %605 = vdwg.mxu0
        %606 = vmax.xlane.f32.xlu0 %v601
        %v607 = vpop.xlane.xlu0 %606
        %v608 = vsub.f32 %v601, %v607
        %v609 = vmul.f32 %v608, 1.442695
        %v610 = vpow.pop %v609
        %611 = vadd.xlane.f32.xlu0 %v610
        %v612 = vpop.xlane.xlu0 %611
        %v613 = vrcp.pop %v612
        %v614 = vmul.f32 %v610, %v613
        %v615 = vpack.c.bf16 %v614, %v614
        %616 = vst [vmem:[%s388] sm:$0xf] %v615
        %v617 = vld [vmem:[%s397] sm:$0xff]
        %v618 = vlaneseq
        %v619 = vand.u32 %v618, 127
        %620 = vset.pattern.permute.xlu0 0
        %621 = vperm.xlu0 %620, %v617
        %v622 = vpop.permute.xlu0 %621
        %vm623 = vcmp.eq.s32.totalorder %v619, %v622
        %v624 = vsel %vm623, %v608, 0.0
        %625 = vadd.xlane.f32.xlu0 %v624
        %v626 = vpop.xlane.xlu0 %625
        %v627 = vsel %vm623, %v610, 0.0
        %628 = vadd.xlane.f32.xlu0 %v627
        %v629 = vpop.xlane.xlu0 %628
        %v630 = vlog2.pop %v612
        %v631 = vmul.f32 %v630, 0.6931472
        %v632 = vsub.f32 %v631, %v626
        %v633 = vrcp.pop %v612
        %v634 = vmul.f32 %v629, %v633
        %v635 = vsub.f32 1.0, %v634
        %v636 = vmul.f32 %v635, %v635
        %v637 = vmul.f32 %v636, %v632
        %s638 = smul.u32 %s28, 8
        %v639 = vlaneseq
        %v640 = vshrl.u32 %v639, 7
        %v641 = vstv %s638
        %v642 = vadd.s32 %v641, %v640
        %vm643 = vcmp.lt.s32.totalorder %v642, 12
        %v644 = vsel %vm643, %v637, 0.0
        %v645 = vrot.slane %v644, 4
        %v646 = vadd.f32 %v644, %v645
        %v647 = vrot.slane %v646, 2
        %v648 = vadd.f32 %v646, %v647
        %v649 = vrot.slane %v648, 1
        %v650 = vadd.f32 %v648, %v649
        %vm651 = vcmask 0
        %652 = vst.msk [vmem:[%s400] sm:$0x1] %vm651, %v650
        %s653 = sand.u32 %s214, 1
        %s654 = scalar_lea.sflag [#allocation4], %s653
        %s655 = sand.u32 %s214, 1
        %s656 = smul.addr %s655, 4
        %s657 = scalar_lea.vmem [#allocation8], %s656
        %p658 = scmp.lt.s32.totalorder %s28, 1
        %s659 = scalar_select %p658, %s28, 1
        %s660 = scalar_lea.vmem %s9, %s659
        // Predicated region
        $region65: #{tpu_custom_call.1} parent=51 // pred_check
          %p661 = pneg %p224
        $region66: #{tpu_custom_call.1} parent=51 // pred_check_branch
          %663 = sbr.rel (%p661) target = $region68
        $region67: #{tpu_custom_call.1} parent=51 // pred_region
          %s665 = ssub.s32 64, 64
          %666 = vsyncadd %s654, %s665
          %s667 = smul.addr %s28, 64
          %s668 = scalar_lea.hbm %s8, %s667
          %s670 = sshll.u32 %s657, 4
          %s671 = int_to_ptr.vmem [resolvable:$true] %s670
          %673 = dma.vmem_to_hbm [thread:$0]  %s671, 64, %s668, %s654
        $region68: #{tpu_custom_call.1} parent=51 // pred_fallthru
          _
        // Predicated region
        $region69: #{tpu_custom_call.1} parent=51 // pred_check
          %p674 = pneg %p250
        $region70: #{tpu_custom_call.1} parent=51 // pred_check_branch
          %676 = sbr.rel (%p674) target = $region72
        $region71: #{tpu_custom_call.1} parent=51 // pred_region
          _
        $region72: #{tpu_custom_call.1} parent=51 // pred_fallthru
          _
      $region52: #{tpu_custom_call.1} parent=5 // pred_fallthru
        _
      %p677 = scmp.le.s32.totalorder 2, %s23
      // Predicated region
      $region73: #{tpu_custom_call.1} parent=5 // pred_check
        %p678 = pneg %p677
      $region74: #{tpu_custom_call.1} parent=5 // pred_check_branch
        %680 = sbr.rel (%p678) target = $region76
      $region75: #{tpu_custom_call.1} parent=5 // pred_region
        %s681 = ssub.s32 %s23, 2
        // Predicated region
        $region77: #{tpu_custom_call.1} parent=75 // pred_check
          %p682 = pneg %p230
        $region78: #{tpu_custom_call.1} parent=75 // pred_check_branch
          %684 = sbr.rel (%p682) target = $region80
        $region79: #{tpu_custom_call.1} parent=75 // pred_region
          %s685 = sand.u32 %s215, 1
          %s686 = scalar_lea.sflag [#allocation4], %s685
          %s687 = sand.u32 %s215, 1
          %s688 = smul.addr %s687, 4
          %s689 = scalar_lea.vmem [#allocation8], %s688
          %690 = dma.done %s686, 64
        $region80: #{tpu_custom_call.1} parent=75 // pred_fallthru
          _
        // Predicated region
        $region81: #{tpu_custom_call.1} parent=75 // pred_check
          %p691 = pneg %p256
        $region82: #{tpu_custom_call.1} parent=75 // pred_check_branch
          %693 = sbr.rel (%p691) target = $region84
        $region83: #{tpu_custom_call.1} parent=75 // pred_region
          %p694 = scmp.lt.s32.totalorder %s29, 1
          %s695 = scalar_select %p694, %s29, 1
          %s696 = scalar_lea.vmem %s9, %s695
        $region84: #{tpu_custom_call.1} parent=75 // pred_fallthru
          _
      $region76: #{tpu_custom_call.1} parent=5 // pred_fallthru
        _
    $region6: #{tpu_custom_call.1} parent=1 // loop_footer
      %s27 = sadd.s32 1, %s23
    $region7: #{tpu_custom_call.1} parent=1 // loop_footer_branch
      %22 = sbr.rel target = $region3
    $region8: #{tpu_custom_call.1} parent=1 // loop_exit
      _
    %697 = vsyncpa [#allocation3], 1
    %s698 = scalar_lea.sflag [#allocation3], 1
    %699 = vsyncpa %s698, 1
    %700 = vsyncpa [#allocation6], 1
    %701 = vsyncpa [#allocation4], 1
    %s702 = scalar_lea.sflag [#allocation4], 1
    %703 = vsyncpa %s702, 1

</llo_original>
